<compile_context>
chip_gen: v7x
topology: tpu7x:2x2x1
jax: 0.10.0
libtpu: 0.0.40
codegen_flags: <defaults>
</compile_context>

<pallas_src>
import functools
import math

import jax
import jax.numpy as jnp
from jax import lax
from jax.experimental import pallas as pl
from jax.experimental.pallas import tpu as pltpu


def _round_up(n, m):
    return ((n + m - 1) // m) * m


def sinusoid_table(n, d):
    """Same construction as PositionalEmbedding / FixedEmbedding tables."""
    pos = jnp.arange(n, dtype=jnp.float32)[:, None]
    div = jnp.exp(jnp.arange(0, d, 2, dtype=jnp.float32) * -(math.log(10000.0) / d))
    ang = pos * div                                 # (n, d//2)
    tbl = jnp.zeros((n, d), jnp.float32)
    tbl = tbl.at[:, 0::2].set(jnp.sin(ang))
    tbl = tbl.at[:, 1::2].set(jnp.cos(ang))
    return tbl


# ---------------------------------------------------------------------------
# Pallas kernel: fused 3-tap conv-as-one-matmul + temporal multi-hot + positional add
# ---------------------------------------------------------------------------
def data_embedding_kernel(x_ref, idx_ref, w_ref, tbl_ref, pos_ref, out_ref, *, precision):
    # x_ref:   (TL, 3C)   rows [x[t-1] | x[t] | x[t+1]] for one (batch, L-tile)
    # idx_ref: (TL, 8)    int32; cols 0..3 = hour/weekday/day/month rows of tbl_ref
    # w_ref:   (3C, Dp)   stacked conv taps (tap0; tap1; tap2), lane-padded
    # tbl_ref: (128, Dp)  temporal sinusoid table (76 real rows, zero padded)
    # pos_ref: (TL, Dp)   positional sinusoid rows for this L-tile
    # out_ref: (TL, Dp)   lane-dense output tile
    tl = out_ref.shape[0]
    tp = tbl_ref.shape[0]

    # value embedding: ONE MXU matmul over the stacked 3-tap weight
    acc = jnp.dot(x_ref[...], w_ref[...],
                  preferred_element_type=jnp.float32, precision=precision)

    # temporal embedding: multi-hot (4 disjoint ones per row) @ 128-row table
    idx = idx_ref[...]                                     # (TL, 8) int32
    col = lax.broadcasted_iota(jnp.int32, (tl, tp), 1)     # lane index
    hot = (col == idx[:, 0:1])
    for j in range(1, 4):                                  # static unroll; ranges disjoint
        hot = hot | (col == idx[:, j:j + 1])
    acc = acc + jnp.dot(hot.astype(tbl_ref.dtype), tbl_ref[...],
                        preferred_element_type=jnp.float32, precision=precision)

    # positional embedding: plain VPU add of the VMEM-resident tile
    acc = acc + pos_ref[...].astype(jnp.float32)

    out_ref[...] = acc.astype(out_ref.dtype)


# ---------------------------------------------------------------------------
# One-time factory: precomputes constants, returns a jitted forward(x, x_mark)
# ---------------------------------------------------------------------------
def make_data_embedding(w_conv, seq_len, *, l_tile=None,
                        compute_dtype=jnp.float32, out_dtype=jnp.float32):
    """w_conv: (D, C, 3) circular Conv1d weight. Returns forward(x, x_mark)->(B, L, D)."""
    D, C, K = w_conv.shape
    assert K == 3
    L = seq_len

    Dp = _round_up(D, 128)        # lane-dense output width
    Tp = 128                      # 24 + 7 + 32 + 13 = 76 temporal rows, padded to one tile

    # stacked conv weight: tap k multiplies x[t-1+k] (PyTorch circular pad=1, no bias)
    w_stack = jnp.concatenate(
        [w_conv[:, :, 0].T, w_conv[:, :, 1].T, w_conv[:, :, 2].T], axis=0)   # (3C, D)
    w_p = jnp.pad(w_stack, ((0, 0), (0, Dp - D))).astype(compute_dtype)

    # temporal table rows: hour [0,24), weekday [24,31), day [31,63), month [63,76)
    tbl = jnp.concatenate([sinusoid_table(24, D), sinusoid_table(7, D),
                           sinusoid_table(32, D), sinusoid_table(13, D)], axis=0)
    tbl_p = jnp.pad(tbl, ((0, Tp - tbl.shape[0]), (0, Dp - D))).astype(compute_dtype)

    # L tiling: multiple of 8 sublanes, capped so double-buffered tiles stay well
    # inside the default scoped VMEM on v5e/v6e/v7x.
    if l_tile is None:
        l_tile = 512
    TL = max(8, min(_round_up(l_tile, 8), _round_up(L, 8)))
    Lp = _round_up(L, TL)

    # positional table (same rows PositionalEmbedding serves for seq_len L)
    pos_p = jnp.pad(sinusoid_table(L, D),
                    ((0, Lp - L), (0, Dp - D))).astype(compute_dtype)

    # HIGHEST only needed for the exact f32 reference match; bf16 path uses default.
    precision = lax.Precision.HIGHEST if compute_dtype == jnp.float32 else None
    kernel = functools.partial(data_embedding_kernel, precision=precision)

    @jax.jit
    def forward(x, x_mark):
        B, Lx, Cx = x.shape
        assert Lx == L and Cx == C

        # circular neighbours per sequence (roll along axis=1 so the wrap never
        # crosses batch boundaries), then pad L up to the tile multiple.
        x_prev = jnp.roll(x, 1, axis=1)                       # row t holds x[t-1 mod L]
        x_next = jnp.roll(x, -1, axis=1)                      # row t holds x[t+1 mod L]
        x_cat = jnp.concatenate([x_prev, x, x_next], axis=-1)            # (B, L, 3C)
        x_cat = jnp.pad(x_cat, ((0, 0), (0, Lp - L), (0, 0))).astype(compute_dtype)

        # per-row table indices (clamped exactly like the JAX gather reference)
        m = x_mark.astype(jnp.int32)
        idx = jnp.stack([jnp.clip(m[:, :, 4], 0, 23),         # hour    -> rows [0, 24)
                         jnp.clip(m[:, :, 3], 0, 6) + 24,     # weekday -> rows [24, 31)
                         jnp.clip(m[:, :, 2], 0, 31) + 31,    # day     -> rows [31, 63)
                         jnp.clip(m[:, :, 1], 0, 12) + 63],   # month   -> rows [63, 76)
                        axis=-1)                                          # (B, L, 4)
        # cols 4..7 unused; padded L rows pick up tbl row 0 junk but are sliced off below
        idx = jnp.pad(idx, ((0, 0), (0, Lp - L), (0, 4)))                 # (B, Lp, 8)

        out = pl.pallas_call(
            kernel,
            out_shape=jax.ShapeDtypeStruct((B, Lp, Dp), out_dtype),
            grid_spec=pltpu.PrefetchScalarGridSpec(
                num_scalar_prefetch=0,
                grid=(B, Lp // TL),
                in_specs=[
                    pl.BlockSpec((pl.Squeezed(), TL, 3 * C), lambda b, l: (b, l, 0)),
                    pl.BlockSpec((pl.Squeezed(), TL, 8), lambda b, l: (b, l, 0)),
                    pl.BlockSpec((3 * C, Dp), lambda b, l: (0, 0)),   # VMEM-resident weight
                    pl.BlockSpec((Tp, Dp), lambda b, l: (0, 0)),      # VMEM-resident table
                    pl.BlockSpec((TL, Dp), lambda b, l: (l, 0)),      # positional L-tile
                ],
                out_specs=pl.BlockSpec((pl.Squeezed(), TL, Dp), lambda b, l: (b, l, 0)),
            ),
            compiler_params=pltpu.CompilerParams(
                dimension_semantics=("parallel", "parallel")),
        )(x_cat, idx, w_p, tbl_p, pos_p)

        # Padded rows/lanes never leave the jit: this slice fuses with any consumer.
        return out[:, :L, :D]

    return forward


# ---------------------------------------------------------------------------
# Parameter construction (deterministic, in-script)
# ---------------------------------------------------------------------------
def kaiming_normal_conv1d(key, out_ch, in_ch, ksize, negative_slope=0.01):
    """nn.init.kaiming_normal_(mode='fan_in', nonlinearity='leaky_relu')."""
    fan_in = in_ch * ksize
    gain = math.sqrt(2.0 / (1.0 + negative_slope ** 2))
    std = gain / math.sqrt(fan_in)
    return std * jax.random.normal(key, (out_ch, in_ch, ksize), dtype=jnp.float32)


def temporal_embedding_fixed(x_mark, d_model):
    """TemporalEmbedding with FixedEmbedding tables, freq='h' (no minute)."""
    idx = x_mark.astype(jnp.int32)
    month_tbl = sinusoid_table(13, d_model)
    day_tbl = sinusoid_table(32, d_model)
    weekday_tbl = sinusoid_table(7, d_model)
    hour_tbl = sinusoid_table(24, d_model)
    return (hour_tbl[idx[:, :, 4]]
            + weekday_tbl[idx[:, :, 3]]
            + day_tbl[idx[:, :, 2]]
            + month_tbl[idx[:, :, 1]])


# ---------------------------------------------------------------------------
# Pure-JAX reference (for correctness check)
# ---------------------------------------------------------------------------
def reference_forward(x, x_mark, w_conv, d_model):
    B, L, C = x.shape
    x_ncw = jnp.transpose(x, (0, 2, 1))                                  # (B, C, L)
    x_pad = jnp.concatenate([x_ncw[:, :, -1:], x_ncw, x_ncw[:, :, :1]], axis=2)
    y = jax.lax.conv_general_dilated(
        x_pad, w_conv, window_strides=(1,), padding="VALID",
        dimension_numbers=("NCH", "OIH", "NCH"), precision=lax.Precision.HIGHEST)
    val = jnp.transpose(y, (0, 2, 1))                                    # (B, L, D)
    temporal = temporal_embedding_fixed(x_mark, d_model)
    pos = sinusoid_table(L, d_model)[None]                               # (1, L, D)
    return val + temporal + pos


# ---------------------------------------------------------------------------
if __name__ == "__main__":
    B, L, C, D = 2, 8, 4, 32   # batch, seq, input_size, model_dim

    key = jax.random.PRNGKey(0)
    kx, kmark, kw = jax.random.split(key, 3)

    # value series
    x = jax.random.normal(kx, (B, L, C), dtype=jnp.float32)

    # time-mark features: [year, month, weekday, day, hour, minute] (freq='h')
    km = jax.random.split(kmark, 6)
    x_mark = jnp.stack([
        jax.random.randint(km[0], (B, L), 0, 3),    # year (unused)
        jax.random.randint(km[1], (B, L), 0, 13),   # month
        jax.random.randint(km[2], (B, L), 0, 7),    # weekday
        jax.random.randint(km[3], (B, L), 0, 32),   # day
        jax.random.randint(km[4], (B, L), 0, 24),   # hour
        jax.random.randint(km[5], (B, L), 0, 60),   # minute (unused, freq='h')
    ], axis=-1).astype(jnp.float32)

    # TokenEmbedding conv weight, kaiming-normal (deterministic)
    w_conv = kaiming_normal_conv1d(kw, D, C, 3)

    # constants hoisted once; forward is jitted (prep + kernel + slice fused)
    forward = make_data_embedding(w_conv, L)

    out = jax.block_until_ready(forward(x, x_mark))

    ref = reference_forward(x, x_mark, w_conv, D)
    assert out.shape == (B, L, D)
    assert jnp.allclose(out, ref, atol=1e-4, rtol=1e-4), "mismatch vs JAX reference"

    print("KERNEL_OK")
</pallas_src>

<mosaic_0001>
module attributes {stable_mosaic.version = 11 : i64} {
  func.func @data_embedding_kernel(%arg0: i32, %arg1: i32, %arg2: memref<1x8x12xf32, #tpu.memory_space<vmem>>, %arg3: memref<1x8x8xi32, #tpu.memory_space<vmem>>, %arg4: memref<12x128xf32, #tpu.memory_space<vmem>>, %arg5: memref<128x128xf32, #tpu.memory_space<vmem>>, %arg6: memref<8x128xf32, #tpu.memory_space<vmem>>, %arg7: memref<1x8x128xf32, #tpu.memory_space<vmem>>) attributes {dimension_semantics = [#tpu.dimension_semantics<parallel>, #tpu.dimension_semantics<parallel>], iteration_bounds = array<i64: 2, 1>, scalar_prefetch = 0 : i64, scratch_operands = 0 : i64, tpu.core_type = #tpu.core_type<tc>, window_params = [{transform_indices = @transform_0, window_bounds = array<i64: 1, 8, 12>}, {transform_indices = @transform_1, window_bounds = array<i64: 1, 8, 8>}, {pipeline_mode = #tpu.pipeline_mode<synchronous>, transform_indices = @transform_2, window_bounds = array<i64: 12, 128>}, {pipeline_mode = #tpu.pipeline_mode<synchronous>, transform_indices = @transform_3, window_bounds = array<i64: 128, 128>}, {transform_indices = @transform_4, window_bounds = array<i64: 8, 128>}, {transform_indices = @transform_5, window_bounds = array<i64: 1, 8, 128>}]} {
    %c0 = arith.constant 0 : index
    %c0_0 = arith.constant 0 : index
    %c0_1 = arith.constant 0 : index
    %0 = vector.load %arg2[%c0, %c0_0, %c0_1] : memref<1x8x12xf32, #tpu.memory_space<vmem>>, vector<1x8x12xf32>
    %1 = vector.shape_cast %0 : vector<1x8x12xf32> to vector<8x12xf32>
    %c0_2 = arith.constant 0 : index
    %c0_3 = arith.constant 0 : index
    %2 = vector.load %arg4[%c0_2, %c0_3] : memref<12x128xf32, #tpu.memory_space<vmem>>, vector<12x128xf32>
    %cst = arith.constant dense<0.000000e+00> : vector<8x128xf32>
    %3 = tpu.matmul %1, %2, %cst {dimension_numbers = #tpu.dot_dimension_numbers<[1], [0], [0], [1], [0, 0, 1, 1], [], []>, precision = #tpu.contract_precision<fp32>} : vector<8x12xf32>, vector<12x128xf32>, vector<8x128xf32> -> vector<8x128xf32>
    %c0_4 = arith.constant 0 : index
    %c0_5 = arith.constant 0 : index
    %c0_6 = arith.constant 0 : index
    %4 = vector.load %arg3[%c0_4, %c0_5, %c0_6] : memref<1x8x8xi32, #tpu.memory_space<vmem>>, vector<1x8x8xi32>
    %5 = vector.shape_cast %4 : vector<1x8x8xi32> to vector<8x8xi32>
    %6 = tpu.iota {dimensions = array<i32: 1>} : vector<8x128xi32>
    %7 = vector.extract_strided_slice %5 {offsets = [0, 0], sizes = [8, 1], strides = [1, 1]} : vector<8x8xi32> to vector<8x1xi32>
    %8 = vector.broadcast %7 : vector<8x1xi32> to vector<8x128xi32>
    %9 = arith.cmpi eq, %6, %8 : vector<8x128xi32>
    %10 = vector.extract_strided_slice %5 {offsets = [0, 1], sizes = [8, 1], strides = [1, 1]} : vector<8x8xi32> to vector<8x1xi32>
    %11 = vector.broadcast %10 : vector<8x1xi32> to vector<8x128xi32>
    %12 = arith.cmpi eq, %6, %11 : vector<8x128xi32>
    %13 = arith.ori %9, %12 : vector<8x128xi1>
    %14 = vector.extract_strided_slice %5 {offsets = [0, 2], sizes = [8, 1], strides = [1, 1]} : vector<8x8xi32> to vector<8x1xi32>
    %15 = vector.broadcast %14 : vector<8x1xi32> to vector<8x128xi32>
    %16 = arith.cmpi eq, %6, %15 : vector<8x128xi32>
    %17 = arith.ori %13, %16 : vector<8x128xi1>
    %18 = vector.extract_strided_slice %5 {offsets = [0, 3], sizes = [8, 1], strides = [1, 1]} : vector<8x8xi32> to vector<8x1xi32>
    %19 = vector.broadcast %18 : vector<8x1xi32> to vector<8x128xi32>
    %20 = arith.cmpi eq, %6, %19 : vector<8x128xi32>
    %21 = arith.ori %17, %20 : vector<8x128xi1>
    %22 = arith.extui %21 : vector<8x128xi1> to vector<8x128xi32>
    %23 = arith.sitofp %22 : vector<8x128xi32> to vector<8x128xf32>
    %c0_7 = arith.constant 0 : index
    %c0_8 = arith.constant 0 : index
    %24 = vector.load %arg5[%c0_7, %c0_8] : memref<128x128xf32, #tpu.memory_space<vmem>>, vector<128x128xf32>
    %cst_9 = arith.constant dense<0.000000e+00> : vector<8x128xf32>
    %25 = tpu.matmul %23, %24, %cst_9 {dimension_numbers = #tpu.dot_dimension_numbers<[1], [0], [0], [1], [0, 0, 1, 1], [], []>, precision = #tpu.contract_precision<fp32>} : vector<8x128xf32>, vector<128x128xf32>, vector<8x128xf32> -> vector<8x128xf32>
    %26 = arith.addf %3, %25 : vector<8x128xf32>
    %c0_10 = arith.constant 0 : index
    %c0_11 = arith.constant 0 : index
    %27 = vector.load %arg6[%c0_10, %c0_11] : memref<8x128xf32, #tpu.memory_space<vmem>>, vector<8x128xf32>
    %28 = arith.addf %26, %27 : vector<8x128xf32>
    %c0_12 = arith.constant 0 : index
    %c0_13 = arith.constant 0 : index
    %c0_14 = arith.constant 0 : index
    %29 = vector.load %arg7[%c0_12, %c0_13, %c0_14] : memref<1x8x128xf32, #tpu.memory_space<vmem>>, vector<1x8x128xf32>
    %30 = vector.shape_cast %29 : vector<1x8x128xf32> to vector<8x128xf32>
    %31 = vector.shape_cast %28 : vector<8x128xf32> to vector<1x8x128xf32>
    tpu.vector_store %arg7[%c0_12, %c0_13, %c0_14], %31 {strides = array<i32>} : memref<1x8x128xf32, #tpu.memory_space<vmem>>, vector<1x8x128xf32>,
    return
  }
  func.func @transform_0(%arg0: i32, %arg1: i32) -> (i32, i32, i32) {
    %c0_i32 = arith.constant 0 : i32
    %c0_i32_0 = arith.constant 0 : i32
    return %arg0, %arg1, %c0_i32 : i32, i32, i32
  }
  func.func @transform_1(%arg0: i32, %arg1: i32) -> (i32, i32, i32) {
    %c0_i32 = arith.constant 0 : i32
    %c0_i32_0 = arith.constant 0 : i32
    return %arg0, %arg1, %c0_i32 : i32, i32, i32
  }
  func.func @transform_2(%arg0: i32, %arg1: i32) -> (i32, i32) {
    %c0_i32 = arith.constant 0 : i32
    %c0_i32_0 = arith.constant 0 : i32
    %c0_i32_1 = arith.constant 0 : i32
    return %c0_i32, %c0_i32_0 : i32, i32
  }
  func.func @transform_3(%arg0: i32, %arg1: i32) -> (i32, i32) {
    %c0_i32 = arith.constant 0 : i32
    %c0_i32_0 = arith.constant 0 : i32
    %c0_i32_1 = arith.constant 0 : i32
    return %c0_i32, %c0_i32_0 : i32, i32
  }
  func.func @transform_4(%arg0: i32, %arg1: i32) -> (i32, i32) {
    %c0_i32 = arith.constant 0 : i32
    %c0_i32_0 = arith.constant 0 : i32
    return %arg1, %c0_i32 : i32, i32
  }
  func.func @transform_5(%arg0: i32, %arg1: i32) -> (i32, i32, i32) {
    %c0_i32 = arith.constant 0 : i32
    %c0_i32_0 = arith.constant 0 : i32
    return %arg0, %arg1, %c0_i32 : i32, i32, i32
  }
}

</mosaic_0001>

<llo_original>
// kernel: forward.1
$region0: #{forward.1}
  #allocation0 [shape = 'u32[]', space=smem, size = 0x4, offset = 0x4, fixed_abs, tag = 'smem constant byte address 0x4 - core index']
  #allocation1 [shape = 'u32[144,128]{1,0:T(1,128)}', space=vmem, size = 0x12000, scoped, tag = 'internal scratch']
  %s0 = inlined_call_operand.vmem [shape: f32[2,8,12], index: 0, kind: input, shape index: {}]
  %s1 = inlined_call_operand.vmem [shape: s32[2,8,8], index: 1, kind: input, shape index: {}]
  %s2 = inlined_call_operand.vmem [shape: f32[12,128], index: 2, kind: input, shape index: {}]
  %s3 = inlined_call_operand.vmem [shape: f32[128,128], index: 3, kind: input, shape index: {}]
  %s4 = inlined_call_operand.vmem [shape: f32[8,128], index: 4, kind: input, shape index: {}]
  %s5 = inlined_call_operand.hbm [shape: f32[2,8,128], index: 5, kind: output, shape index: {}]
  %s6 = sld [smem:[#allocation0]]
  $region53: #{forward.1} parent=0
    _
  %s8 = ssub.s32 1, %s6
  %s9 = scalar_select 0, %s8, %s6
  $region1: #{forward.1} parent=0
    #allocation2 [shape = 'u8[8192]{0}', space=vmem, size = 0x2000, scoped, tag = 'output window, operand 0']
    #allocation3 [shape = 's32[2]{0}', space=sflag, size = 0x8, scoped, tag = 'scoped memory for forward.1']
    %10 = vsyncpa [#allocation3], 0
    %s11 = scalar_lea.sflag [#allocation3], 1
    %12 = vsyncpa %s11, 0
    loop: start=0, step=1, limit=4
    $region2: #{forward.1} parent=1 // loop_pre_header
      _
    $region3: #{forward.1} parent=1 // loop_header
      %s14 = sphi 0, %s18
      %p15 = scmp.ge.s32.totalorder %s14, 4
      %s21 = sphi 0, %s33
      %s22 = sphi 0, %s29
      %s23 = sphi 0, %s21
      %s24 = sphi 0, %s22
      %s25 = sphi 0, %s23
      %s26 = sphi 0, %s24
      %s38 = sphi 0, %s40
      %s41 = sphi 0, %s38
      %s42 = sphi 0, %s41
      %s58 = sphi 0, %s42
      %s66 = sphi 0, %s68
      %s69 = sphi 0, %s66
      %s70 = sphi 0, %s69
      %s86 = sphi 0, %s70
      %s90 = sphi 0, %s90
      %s92 = sphi 0, %s90
      %s93 = sphi 0, %s92
      %s107 = sphi 0, %s93
      %s111 = sphi 0, %s111
      %s113 = sphi 0, %s111
      %s114 = sphi 0, %s113
      %s128 = sphi 0, %s114
      %s134 = sphi 0, %s136
      %s137 = sphi 0, %s134
      %s138 = sphi 0, %s137
      %s154 = sphi 0, %s138
      %s162 = sphi 0, %s164
      %s165 = sphi 0, %s162
      %s166 = sphi 0, %s165
      %s182 = sphi 0, %s166
    $region4: #{forward.1} parent=1 // loop_header_branch
      %17 = sbr.rel (%p15) target = $region8
    $region5: #{forward.1} parent=1 // loop_body
      %s19 = ssub.s32 %s14, 1
      %s20 = ssub.s32 %s14, 2
      %s27 = sadd.s32 1, %s22
      %p28 = scmp.ge.s32.totalorder %s27, 1
      %s29 = scalar_select %p28, 0, %s27
      %s30 = sadd.s32 1, %s21
      %s31 = scalar_select %p28, %s30, %s21
      %p32 = scmp.ge.s32.totalorder %s31, 2
      %s33 = scalar_select %p32, 0, %s31
      %s34 = ssub.s32 %s21, %s33
      %s35 = ssub.s32 %s22, %s29
      %s36 = sor.u32 %s34, %s35
      %p37 = scmp.eq.s32.totalorder %s36, 0
      %s39 = sadd.s32 %s38, 1
      %s40 = scalar_select %p37, %s38, %s39
      %p43 = pneg %p37
      %p44 = scmp.eq.s32.totalorder %s14, 1
      %p45 = por %p43, %p44
      %p46 = scmp.ne.s32.totalorder %s38, %s41
      %p47 = scmp.eq.s32.totalorder %s14, 0
      %p48 = por %p46, %p47
      %p49 = scmp.ne.s32.totalorder %s38, %s41
      %p50 = scmp.eq.s32.totalorder %s19, 1
      %p51 = por %p49, %p50
      %p52 = scmp.ne.s32.totalorder %s41, %s42
      %p53 = scmp.eq.s32.totalorder %s19, 0
      %p54 = por %p52, %p53
      %p55 = scmp.ne.s32.totalorder %s41, %s42
      %p56 = scmp.eq.s32.totalorder %s20, 1
      %p57 = por %p55, %p56
      %p59 = scmp.ne.s32.totalorder %s42, %s58
      %p60 = scmp.eq.s32.totalorder %s20, 0
      %p61 = por %p59, %p60
      %s62 = ssub.s32 %s21, %s33
      %s63 = ssub.s32 %s22, %s29
      %s64 = sor.u32 %s62, %s63
      %p65 = scmp.eq.s32.totalorder %s64, 0
      %s67 = sadd.s32 %s66, 1
      %s68 = scalar_select %p65, %s66, %s67
      %p71 = pneg %p65
      %p72 = scmp.eq.s32.totalorder %s14, 1
      %p73 = por %p71, %p72
      %p74 = scmp.ne.s32.totalorder %s66, %s69
      %p75 = scmp.eq.s32.totalorder %s14, 0
      %p76 = por %p74, %p75
      %p77 = scmp.ne.s32.totalorder %s66, %s69
      %p78 = scmp.eq.s32.totalorder %s19, 1
      %p79 = por %p77, %p78
      %p80 = scmp.ne.s32.totalorder %s69, %s70
      %p81 = scmp.eq.s32.totalorder %s19, 0
      %p82 = por %p80, %p81
      %p83 = scmp.ne.s32.totalorder %s69, %s70
      %p84 = scmp.eq.s32.totalorder %s20, 1
      %p85 = por %p83, %p84
      %p87 = scmp.ne.s32.totalorder %s70, %s86
      %p88 = scmp.eq.s32.totalorder %s20, 0
      %p89 = por %p87, %p88
      %s91 = sadd.s32 %s90, 1
      %p94 = scmp.eq.s32.totalorder %s14, 1
      %p95 = scmp.ne.s32.totalorder %s90, %s92
      %p96 = scmp.eq.s32.totalorder %s14, 0
      %p97 = por %p95, %p96
      %p98 = scmp.ne.s32.totalorder %s90, %s92
      %p99 = scmp.eq.s32.totalorder %s19, 1
      %p100 = por %p98, %p99
      %p101 = scmp.ne.s32.totalorder %s92, %s93
      %p102 = scmp.eq.s32.totalorder %s19, 0
      %p103 = por %p101, %p102
      %p104 = scmp.ne.s32.totalorder %s92, %s93
      %p105 = scmp.eq.s32.totalorder %s20, 1
      %p106 = por %p104, %p105
      %p108 = scmp.ne.s32.totalorder %s93, %s107
      %p109 = scmp.eq.s32.totalorder %s20, 0
      %p110 = por %p108, %p109
      %s112 = sadd.s32 %s111, 1
      %p115 = scmp.eq.s32.totalorder %s14, 1
      %p116 = scmp.ne.s32.totalorder %s111, %s113
      %p117 = scmp.eq.s32.totalorder %s14, 0
      %p118 = por %p116, %p117
      %p119 = scmp.ne.s32.totalorder %s111, %s113
      %p120 = scmp.eq.s32.totalorder %s19, 1
      %p121 = por %p119, %p120
      %p122 = scmp.ne.s32.totalorder %s113, %s114
      %p123 = scmp.eq.s32.totalorder %s19, 0
      %p124 = por %p122, %p123
      %p125 = scmp.ne.s32.totalorder %s113, %s114
      %p126 = scmp.eq.s32.totalorder %s20, 1
      %p127 = por %p125, %p126
      %p129 = scmp.ne.s32.totalorder %s114, %s128
      %p130 = scmp.eq.s32.totalorder %s20, 0
      %p131 = por %p129, %p130
      %s132 = ssub.s32 %s22, %s29
      %p133 = scmp.eq.s32.totalorder %s132, 0
      %s135 = sadd.s32 %s134, 1
      %s136 = scalar_select %p133, %s134, %s135
      %p139 = pneg %p133
      %p140 = scmp.eq.s32.totalorder %s14, 1
      %p141 = por %p139, %p140
      %p142 = scmp.ne.s32.totalorder %s134, %s137
      %p143 = scmp.eq.s32.totalorder %s14, 0
      %p144 = por %p142, %p143
      %p145 = scmp.ne.s32.totalorder %s134, %s137
      %p146 = scmp.eq.s32.totalorder %s19, 1
      %p147 = por %p145, %p146
      %p148 = scmp.ne.s32.totalorder %s137, %s138
      %p149 = scmp.eq.s32.totalorder %s19, 0
      %p150 = por %p148, %p149
      %p151 = scmp.ne.s32.totalorder %s137, %s138
      %p152 = scmp.eq.s32.totalorder %s20, 1
      %p153 = por %p151, %p152
      %p155 = scmp.ne.s32.totalorder %s138, %s154
      %p156 = scmp.eq.s32.totalorder %s20, 0
      %p157 = por %p155, %p156
      %s158 = ssub.s32 %s21, %s33
      %s159 = ssub.s32 %s22, %s29
      %s160 = sor.u32 %s158, %s159
      %p161 = scmp.eq.s32.totalorder %s160, 0
      %s163 = sadd.s32 %s162, 1
      %s164 = scalar_select %p161, %s162, %s163
      %p167 = pneg %p161
      %p168 = scmp.eq.s32.totalorder %s14, 1
      %p169 = por %p167, %p168
      %p170 = scmp.ne.s32.totalorder %s162, %s165
      %p171 = scmp.eq.s32.totalorder %s14, 0
      %p172 = por %p170, %p171
      %p173 = scmp.ne.s32.totalorder %s162, %s165
      %p174 = scmp.eq.s32.totalorder %s19, 1
      %p175 = por %p173, %p174
      %p176 = scmp.ne.s32.totalorder %s165, %s166
      %p177 = scmp.eq.s32.totalorder %s19, 0
      %p178 = por %p176, %p177
      %p179 = scmp.ne.s32.totalorder %s165, %s166
      %p180 = scmp.eq.s32.totalorder %s20, 1
      %p181 = por %p179, %p180
      %p183 = scmp.ne.s32.totalorder %s166, %s182
      %p184 = scmp.eq.s32.totalorder %s20, 0
      %p185 = por %p183, %p184
      %p186 = scmp.le.s32.totalorder 1, %s14
      %p187 = scmp.lt.s32.totalorder %s14, 3
      %p188 = pnand %p186, %p187
      %p189 = pneg %p188
      // Predicated region
      $region9: #{forward.1} parent=5 // pred_check
        _
      $region10: #{forward.1} parent=5 // pred_check_branch
        %191 = sbr.rel (%p188) target = $region12
      $region11: #{forward.1} parent=5 // pred_region
        %s192 = ssub.s32 %s14, 1
        // Predicated region
        $region13: #{forward.1} parent=11 // pred_check
          %p193 = pneg %p103
        $region14: #{forward.1} parent=11 // pred_check_branch
          %195 = sbr.rel (%p193) target = $region16
        $region15: #{forward.1} parent=11 // pred_region
          _
        $region16: #{forward.1} parent=11 // pred_fallthru
          _
        // Predicated region
        $region17: #{forward.1} parent=11 // pred_check
          %p196 = pneg %p124
        $region18: #{forward.1} parent=11 // pred_check_branch
          %198 = sbr.rel (%p196) target = $region20
        $region19: #{forward.1} parent=11 // pred_region
          _
        $region20: #{forward.1} parent=11 // pred_fallthru
          _
        // Predicated region
        $region21: #{forward.1} parent=11 // pred_check
          %p199 = pneg %p150
        $region22: #{forward.1} parent=11 // pred_check_branch
          %201 = sbr.rel (%p199) target = $region24
        $region23: #{forward.1} parent=11 // pred_region
          %p202 = scmp.lt.s32.totalorder %s24, 0
          %s203 = scalar_select %p202, %s24, 0
          %s204 = smul.addr %s203, 8
          %s205 = scalar_lea.vmem %s4, %s204
        $region24: #{forward.1} parent=11 // pred_fallthru
          _
      $region12: #{forward.1} parent=5 // pred_fallthru
        _
      %p206 = scmp.lt.s32.totalorder %s14, 2
      // Predicated region
      $region25: #{forward.1} parent=5 // pred_check
        %p207 = pneg %p206
      $region26: #{forward.1} parent=5 // pred_check_branch
        %209 = sbr.rel (%p207) target = $region28
      $region27: #{forward.1} parent=5 // pred_region
        // Predicated region
        $region29: #{forward.1} parent=27 // pred_check
          %p210 = pneg %p48
        $region30: #{forward.1} parent=27 // pred_check_branch
          %212 = sbr.rel (%p210) target = $region32
        $region31: #{forward.1} parent=27 // pred_region
          %p213 = scmp.lt.s32.totalorder %s21, 1
          %s214 = scalar_select %p213, %s21, 1
          %p215 = scmp.lt.s32.totalorder %s22, 0
          %s216 = scalar_select %p215, %s22, 0
          %s217 = sadd.s32 %s216, %s214
          %s218 = smul.addr %s217, 8
          %s219 = scalar_lea.vmem %s0, %s218
        $region32: #{forward.1} parent=27 // pred_fallthru
          _
        // Predicated region
        $region33: #{forward.1} parent=27 // pred_check
          %p220 = pneg %p76
        $region34: #{forward.1} parent=27 // pred_check_branch
          %222 = sbr.rel (%p220) target = $region36
        $region35: #{forward.1} parent=27 // pred_region
          %p223 = scmp.lt.s32.totalorder %s21, 1
          %s224 = scalar_select %p223, %s21, 1
          %p225 = scmp.lt.s32.totalorder %s22, 0
          %s226 = scalar_select %p225, %s22, 0
          %s227 = sadd.s32 %s226, %s224
          %s228 = smul.addr %s227, 8
          %s229 = scalar_lea.vmem %s1, %s228
        $region36: #{forward.1} parent=27 // pred_fallthru
          _
      $region28: #{forward.1} parent=5 // pred_fallthru
        _
      %p230 = scmp.le.s32.totalorder 1, %s14
      %p231 = scmp.lt.s32.totalorder %s14, 3
      %p232 = pnand %p230, %p231
      %p233 = pneg %p232
      // Predicated region
      $region37: #{forward.1} parent=5 // pred_check
        _
      $region38: #{forward.1} parent=5 // pred_check_branch
        %235 = sbr.rel (%p232) target = $region40
      $region39: #{forward.1} parent=5 // pred_region
        %s236 = ssub.s32 %s14, 1
        %p237 = scmp.lt.s32.totalorder %s23, 1
        %s238 = scalar_select %p237, %s23, 1
        %p239 = scmp.lt.s32.totalorder %s24, 0
        %s240 = scalar_select %p239, %s24, 0
        %s241 = sadd.s32 %s240, %s238
        %s242 = smul.addr %s241, 8
        %s243 = scalar_lea.vmem %s0, %s242
        %p244 = pneg %p54
        %p245 = pneg %p51
        %p246 = scmp.lt.s32.totalorder %s23, 1
        %s247 = scalar_select %p246, %s23, 1
        %p248 = scmp.lt.s32.totalorder %s24, 0
        %s249 = scalar_select %p248, %s24, 0
        %s250 = sadd.s32 %s249, %s247
        %s251 = smul.addr %s250, 8
        %s252 = scalar_lea.vmem %s1, %s251
        %p253 = pneg %p82
        %p254 = pneg %p79
        %p255 = pneg %p103
        %p256 = pneg %p100
        %p257 = pneg %p124
        %p258 = pneg %p121
        %p259 = scmp.lt.s32.totalorder %s24, 0
        %s260 = scalar_select %p259, %s24, 0
        %s261 = smul.addr %s260, 8
        %s262 = scalar_lea.vmem %s4, %s261
        %p263 = pneg %p150
        %p264 = pneg %p147
        %p265 = pneg %p178
        %p266 = pneg %p175
        %s267 = sand.u32 %s165, 1
        %s268 = scalar_lea.sflag [#allocation3], %s267
        %s269 = sand.u32 %s165, 1
        %s270 = smul.addr %s269, 8
        %s271 = scalar_lea.vmem [#allocation2], %s270
        %p272 = scmp.lt.s32.totalorder %s23, 1
        %s273 = scalar_select %p272, %s23, 1
        %p274 = scmp.lt.s32.totalorder %s24, 0
        %s275 = scalar_select %p274, %s24, 0
        %s276 = sadd.s32 %s275, %s273
        %s277 = smul.addr %s276, 8
        %s278 = scalar_lea.vmem %s0, %s277
        %p279 = scmp.lt.s32.totalorder %s23, 1
        %s280 = scalar_select %p279, %s23, 1
        %p281 = scmp.lt.s32.totalorder %s24, 0
        %s282 = scalar_select %p281, %s24, 0
        %s283 = sadd.s32 %s282, %s280
        %s284 = smul.addr %s283, 8
        %s285 = scalar_lea.vmem %s1, %s284
        %p286 = scmp.lt.s32.totalorder %s24, 0
        %s287 = scalar_select %p286, %s24, 0
        %s288 = smul.addr %s287, 8
        %s289 = scalar_lea.vmem %s4, %s288
        %v290 = vld [vmem:[%s278] sm:$0xff]
        %v291 = vld [vmem:[%s2] sm:$0xff]
        %v292 = vld [vmem:[%s2 + $0x8] sm:$0xf]
        %v293 = vld [vmem:[%s285] sm:$0xff]
        %v294 = vlaneseq
        %v295 = vand.u32 %v294, 127
        %296 = vset.pattern.permute.xlu0 0
        %297 = vperm.xlu0 %296, %v293
        %v298 = vpop.permute.xlu0 %297
        %vm299 = vcmp.eq.s32.totalorder %v295, %v298
        %300 = vset.pattern.permute.xlu0 1
        %301 = vperm.xlu0 %300, %v293
        %v302 = vpop.permute.xlu0 %301
        %vm303 = vcmp.eq.s32.totalorder %v295, %v302
        %vm304 = vmor %vm299, %vm303
        %305 = vset.pattern.permute.xlu0 2
        %306 = vperm.xlu0 %305, %v293
        %v307 = vpop.permute.xlu0 %306
        %vm308 = vcmp.eq.s32.totalorder %v295, %v307
        %vm309 = vmor %vm304, %vm308
        %310 = vset.pattern.permute.xlu0 3
        %311 = vperm.xlu0 %310, %v293
        %v312 = vpop.permute.xlu0 %311
        %vm313 = vcmp.eq.s32.totalorder %v295, %v312
        %vm314 = vmor %vm309, %vm313
        %v315 = vsel %vm314, 1, 0
        %v316 = vcvt.s32.f32 %v315
        %v317 = vld [vmem:[%s3] sm:$0xff]
        %v318 = vld [vmem:[%s3 + $0x8] sm:$0xff]
        %v319 = vld [vmem:[%s3 + $0x10] sm:$0xff]
        %v320 = vld [vmem:[%s3 + $0x18] sm:$0xff]
        %v321 = vld [vmem:[%s3 + $0x20] sm:$0xff]
        %v322 = vld [vmem:[%s3 + $0x28] sm:$0xff]
        %v323 = vld [vmem:[%s3 + $0x30] sm:$0xff]
        %v324 = vld [vmem:[%s3 + $0x38] sm:$0xff]
        %v325 = vld [vmem:[%s3 + $0x40] sm:$0xff]
        %v326 = vld [vmem:[%s3 + $0x48] sm:$0xff]
        %v327 = vld [vmem:[%s3 + $0x50] sm:$0xff]
        %v328 = vld [vmem:[%s3 + $0x58] sm:$0xff]
        %v329 = vld [vmem:[%s3 + $0x60] sm:$0xff]
        %v330 = vld [vmem:[%s3 + $0x68] sm:$0xff]
        %v331 = vld [vmem:[%s3 + $0x70] sm:$0xff]
        %v332 = vld [vmem:[%s3 + $0x78] sm:$0xff]
        %333 = vmatprep.subr.mxu0 0.0
        %v334 = vand.u32 %v317, 4294901760
        %335 = vmatpush1.msra.mxu0 %v334
        %336 = vmatprep.subr.mxu0 0.0
        %v337 = vand.u32 %v318, 4294901760
        %338 = vmatpush1.msra.mxu0 %v337
        %339 = vmatprep.subr.mxu0 0.0
        %v340 = vand.u32 %v319, 4294901760
        %341 = vmatpush1.msra.mxu0 %v340
        %342 = vmatprep.subr.mxu0 0.0
        %v343 = vand.u32 %v320, 4294901760
        %344 = vmatpush1.msra.mxu0 %v343
        %345 = vmatprep.subr.mxu0 0.0
        %v346 = vand.u32 %v321, 4294901760
        %347 = vmatpush1.msra.mxu0 %v346
        %348 = vmatprep.subr.mxu0 0.0
        %v349 = vand.u32 %v322, 4294901760
        %350 = vmatpush1.msra.mxu0 %v349
        %351 = vmatprep.subr.mxu0 0.0
        %v352 = vand.u32 %v323, 4294901760
        %353 = vmatpush1.msra.mxu0 %v352
        %354 = vmatprep.subr.mxu0 0.0
        %v355 = vand.u32 %v324, 4294901760
        %356 = vmatpush1.msra.mxu0 %v355
        %357 = vmatprep.subr.mxu0 0.0
        %v358 = vand.u32 %v325, 4294901760
        %359 = vmatpush1.msra.mxu0 %v358
        %360 = vmatprep.subr.mxu0 0.0
        %v361 = vand.u32 %v326, 4294901760
        %362 = vmatpush1.msra.mxu0 %v361
        %363 = vmatprep.subr.mxu0 0.0
        %v364 = vand.u32 %v327, 4294901760
        %365 = vmatpush1.msra.mxu0 %v364
        %366 = vmatprep.subr.mxu0 0.0
        %v367 = vand.u32 %v328, 4294901760
        %368 = vmatpush1.msra.mxu0 %v367
        %369 = vmatprep.subr.mxu0 0.0
        %v370 = vand.u32 %v329, 4294901760
        %371 = vmatpush1.msra.mxu0 %v370
        %372 = vmatprep.subr.mxu0 0.0
        %v373 = vand.u32 %v330, 4294901760
        %374 = vmatpush1.msra.mxu0 %v373
        %375 = vmatprep.subr.mxu0 0.0
        %v376 = vand.u32 %v331, 4294901760
        %377 = vmatpush1.msra.mxu0 %v376
        %378 = vmatprep.subr.mxu0 0.0
        %v379 = vand.u32 %v332, 4294901760
        %380 = vmatpush1.msra.mxu0 %v379
        %381 = vmatprep.subr.mxu0 0.0
        %382 = vmatpush1.msra.mxu0 0.0
        %383 = vmatprep.subr.mxu0 0.0
        %384 = vmatpush1.msra.mxu0 0.0
        %385 = vmatprep.subr.mxu0 0.0
        %386 = vmatpush1.msra.mxu0 0.0
        %387 = vmatprep.subr.mxu0 0.0
        %388 = vmatpush1.msra.mxu0 0.0
        %389 = vmatprep.subr.mxu0 0.0
        %390 = vmatpush1.msra.mxu0 0.0
        %391 = vmatprep.subr.mxu0 0.0
        %392 = vmatpush1.msra.mxu0 0.0
        %393 = vmatprep.subr.mxu0 0.0
        %394 = vmatpush1.msra.mxu0 0.0
        %395 = vmatprep.subr.mxu0 0.0
        %396 = vmatpush1.msra.mxu0 0.0
        %397 = vmatprep.subr.mxu0 0.0
        %398 = vmatpush1.msra.mxu0 0.0
        %399 = vmatprep.subr.mxu0 0.0
        %400 = vmatpush1.msra.mxu0 0.0
        %401 = vmatprep.subr.mxu0 0.0
        %402 = vmatpush1.msra.mxu0 0.0
        %403 = vmatprep.subr.mxu0 0.0
        %404 = vmatpush1.msra.mxu0 0.0
        %405 = vmatprep.subr.mxu0 0.0
        %406 = vmatpush1.msra.mxu0 0.0
        %407 = vmatprep.subr.mxu0 0.0
        %408 = vmatpush1.msra.mxu0 0.0
        %409 = vmatprep.subr.mxu0 0.0
        %410 = vmatpush1.msra.mxu0 0.0
        %411 = vmatprep.subr.mxu0 0.0
        %412 = vmatpush1.msra.mxu0 0.0
        %413 = vmatprep.mubr.f32.mxu0 0.0
        %v414 = vand.u32 %v316, 4294901760
        %v415 = vsub.f32 %v316, %v414
        %v416 = vand.u32 %v415, 4294901760
        %v417 = vsub.f32 %v415, %v416
        %v418 = vand.u32 %v417, 4294901760
        %419 = vmatmul.mubr.f32.gmra.mrb[0].mxu0 %v418
        %v420 = vpop.f32.mrb[0].mxu0
        %v421 = vadd.f32 0.0, %v420
        %v422 = vpop.f32.mrb[0].mxu0
        %423 = vdwg.mxu0
        %424 = vmatprep.subr.mxu0 0.0
        %v425 = vand.u32 %v317, 4294901760
        %v426 = vsub.f32 %v317, %v425
        %v427 = vand.u32 %v426, 4294901760
        %v428 = vsub.f32 %v426, %v427
        %v429 = vand.u32 %v428, 4294901760
        %430 = vmatpush1.msra.mxu0 %v429
        %431 = vmatprep.subr.mxu0 0.0
        %v432 = vand.u32 %v318, 4294901760
        %v433 = vsub.f32 %v318, %v432
        %v434 = vand.u32 %v433, 4294901760
        %v435 = vsub.f32 %v433, %v434
        %v436 = vand.u32 %v435, 4294901760
        %437 = vmatpush1.msra.mxu0 %v436
        %438 = vmatprep.subr.mxu0 0.0
        %v439 = vand.u32 %v319, 4294901760
        %v440 = vsub.f32 %v319, %v439
        %v441 = vand.u32 %v440, 4294901760
        %v442 = vsub.f32 %v440, %v441
        %v443 = vand.u32 %v442, 4294901760
        %444 = vmatpush1.msra.mxu0 %v443
        %445 = vmatprep.subr.mxu0 0.0
        %v446 = vand.u32 %v320, 4294901760
        %v447 = vsub.f32 %v320, %v446
        %v448 = vand.u32 %v447, 4294901760
        %v449 = vsub.f32 %v447, %v448
        %v450 = vand.u32 %v449, 4294901760
        %451 = vmatpush1.msra.mxu0 %v450
        %452 = vmatprep.subr.mxu0 0.0
        %v453 = vand.u32 %v321, 4294901760
        %v454 = vsub.f32 %v321, %v453
        %v455 = vand.u32 %v454, 4294901760
        %v456 = vsub.f32 %v454, %v455
        %v457 = vand.u32 %v456, 4294901760
        %458 = vmatpush1.msra.mxu0 %v457
        %459 = vmatprep.subr.mxu0 0.0
        %v460 = vand.u32 %v322, 4294901760
        %v461 = vsub.f32 %v322, %v460
        %v462 = vand.u32 %v461, 4294901760
        %v463 = vsub.f32 %v461, %v462
        %v464 = vand.u32 %v463, 4294901760
        %465 = vmatpush1.msra.mxu0 %v464
        %466 = vmatprep.subr.mxu0 0.0
        %v467 = vand.u32 %v323, 4294901760
        %v468 = vsub.f32 %v323, %v467
        %v469 = vand.u32 %v468, 4294901760
        %v470 = vsub.f32 %v468, %v469
        %v471 = vand.u32 %v470, 4294901760
        %472 = vmatpush1.msra.mxu0 %v471
        %473 = vmatprep.subr.mxu0 0.0
        %v474 = vand.u32 %v324, 4294901760
        %v475 = vsub.f32 %v324, %v474
        %v476 = vand.u32 %v475, 4294901760
        %v477 = vsub.f32 %v475, %v476
        %v478 = vand.u32 %v477, 4294901760
        %479 = vmatpush1.msra.mxu0 %v478
        %480 = vmatprep.subr.mxu0 0.0
        %v481 = vand.u32 %v325, 4294901760
        %v482 = vsub.f32 %v325, %v481
        %v483 = vand.u32 %v482, 4294901760
        %v484 = vsub.f32 %v482, %v483
        %v485 = vand.u32 %v484, 4294901760
        %486 = vmatpush1.msra.mxu0 %v485
        %487 = vmatprep.subr.mxu0 0.0
        %v488 = vand.u32 %v326, 4294901760
        %v489 = vsub.f32 %v326, %v488
        %v490 = vand.u32 %v489, 4294901760
        %v491 = vsub.f32 %v489, %v490
        %v492 = vand.u32 %v491, 4294901760
        %493 = vmatpush1.msra.mxu0 %v492
        %494 = vmatprep.subr.mxu0 0.0
        %v495 = vand.u32 %v327, 4294901760
        %v496 = vsub.f32 %v327, %v495
        %v497 = vand.u32 %v496, 4294901760
        %v498 = vsub.f32 %v496, %v497
        %v499 = vand.u32 %v498, 4294901760
        %500 = vmatpush1.msra.mxu0 %v499
        %501 = vmatprep.subr.mxu0 0.0
        %v502 = vand.u32 %v328, 4294901760
        %v503 = vsub.f32 %v328, %v502
        %v504 = vand.u32 %v503, 4294901760
        %v505 = vsub.f32 %v503, %v504
        %v506 = vand.u32 %v505, 4294901760
        %507 = vmatpush1.msra.mxu0 %v506
        %508 = vmatprep.subr.mxu0 0.0
        %v509 = vand.u32 %v329, 4294901760
        %v510 = vsub.f32 %v329, %v509
        %v511 = vand.u32 %v510, 4294901760
        %v512 = vsub.f32 %v510, %v511
        %v513 = vand.u32 %v512, 4294901760
        %514 = vmatpush1.msra.mxu0 %v513
        %515 = vmatprep.subr.mxu0 0.0
        %v516 = vand.u32 %v330, 4294901760
        %v517 = vsub.f32 %v330, %v516
        %v518 = vand.u32 %v517, 4294901760
        %v519 = vsub.f32 %v517, %v518
        %v520 = vand.u32 %v519, 4294901760
        %521 = vmatpush1.msra.mxu0 %v520
        %522 = vmatprep.subr.mxu0 0.0
        %v523 = vand.u32 %v331, 4294901760
        %v524 = vsub.f32 %v331, %v523
        %v525 = vand.u32 %v524, 4294901760
        %v526 = vsub.f32 %v524, %v525
        %v527 = vand.u32 %v526, 4294901760
        %528 = vmatpush1.msra.mxu0 %v527
        %529 = vmatprep.subr.mxu0 0.0
        %v530 = vand.u32 %v332, 4294901760
        %v531 = vsub.f32 %v332, %v530
        %v532 = vand.u32 %v531, 4294901760
        %v533 = vsub.f32 %v531, %v532
        %v534 = vand.u32 %v533, 4294901760
        %535 = vmatpush1.msra.mxu0 %v534
        %536 = vmatprep.subr.mxu0 0.0
        %537 = vmatpush1.msra.mxu0 0.0
        %538 = vmatprep.subr.mxu0 0.0
        %539 = vmatpush1.msra.mxu0 0.0
        %540 = vmatprep.subr.mxu0 0.0
        %541 = vmatpush1.msra.mxu0 0.0
        %542 = vmatprep.subr.mxu0 0.0
        %543 = vmatpush1.msra.mxu0 0.0
        %544 = vmatprep.subr.mxu0 0.0
        %545 = vmatpush1.msra.mxu0 0.0
        %546 = vmatprep.subr.mxu0 0.0
        %547 = vmatpush1.msra.mxu0 0.0
        %548 = vmatprep.subr.mxu0 0.0
        %549 = vmatpush1.msra.mxu0 0.0
        %550 = vmatprep.subr.mxu0 0.0
        %551 = vmatpush1.msra.mxu0 0.0
        %552 = vmatprep.subr.mxu0 0.0
        %553 = vmatpush1.msra.mxu0 0.0
        %554 = vmatprep.subr.mxu0 0.0
        %555 = vmatpush1.msra.mxu0 0.0
        %556 = vmatprep.subr.mxu0 0.0
        %557 = vmatpush1.msra.mxu0 0.0
        %558 = vmatprep.subr.mxu0 0.0
        %559 = vmatpush1.msra.mxu0 0.0
        %560 = vmatprep.subr.mxu0 0.0
        %561 = vmatpush1.msra.mxu0 0.0
        %562 = vmatprep.subr.mxu0 0.0
        %563 = vmatpush1.msra.mxu0 0.0
        %564 = vmatprep.subr.mxu0 0.0
        %565 = vmatpush1.msra.mxu0 0.0
        %566 = vmatprep.subr.mxu0 0.0
        %567 = vmatpush1.msra.mxu0 0.0
        %568 = vmatprep.mubr.f32.mxu0 0.0
        %v569 = vand.u32 %v316, 4294901760
        %570 = vmatmul.mubr.f32.gmra.mrb[0].mxu0 %v569
        %v571 = vpop.f32.mrb[0].mxu0
        %v572 = vadd.f32 %v421, %v571
        %v573 = vpop.f32.mrb[0].mxu0
        %574 = vdwg.mxu0
        %575 = vmatprep.subr.mxu0 0.0
        %v576 = vand.u32 %v317, 4294901760
        %v577 = vsub.f32 %v317, %v576
        %578 = vmatpush1.msra.mxu0 %v577
        %579 = vmatprep.subr.mxu0 0.0
        %v580 = vand.u32 %v318, 4294901760
        %v581 = vsub.f32 %v318, %v580
        %582 = vmatpush1.msra.mxu0 %v581
        %583 = vmatprep.subr.mxu0 0.0
        %v584 = vand.u32 %v319, 4294901760
        %v585 = vsub.f32 %v319, %v584
        %586 = vmatpush1.msra.mxu0 %v585
        %587 = vmatprep.subr.mxu0 0.0
        %v588 = vand.u32 %v320, 4294901760
        %v589 = vsub.f32 %v320, %v588
        %590 = vmatpush1.msra.mxu0 %v589
        %591 = vmatprep.subr.mxu0 0.0
        %v592 = vand.u32 %v321, 4294901760
        %v593 = vsub.f32 %v321, %v592
        %594 = vmatpush1.msra.mxu0 %v593
        %595 = vmatprep.subr.mxu0 0.0
        %v596 = vand.u32 %v322, 4294901760
        %v597 = vsub.f32 %v322, %v596
        %598 = vmatpush1.msra.mxu0 %v597
        %599 = vmatprep.subr.mxu0 0.0
        %v600 = vand.u32 %v323, 4294901760
        %v601 = vsub.f32 %v323, %v600
        %602 = vmatpush1.msra.mxu0 %v601
        %603 = vmatprep.subr.mxu0 0.0
        %v604 = vand.u32 %v324, 4294901760
        %v605 = vsub.f32 %v324, %v604
        %606 = vmatpush1.msra.mxu0 %v605
        %607 = vmatprep.subr.mxu0 0.0
        %v608 = vand.u32 %v325, 4294901760
        %v609 = vsub.f32 %v325, %v608
        %610 = vmatpush1.msra.mxu0 %v609
        %611 = vmatprep.subr.mxu0 0.0
        %v612 = vand.u32 %v326, 4294901760
        %v613 = vsub.f32 %v326, %v612
        %614 = vmatpush1.msra.mxu0 %v613
        %615 = vmatprep.subr.mxu0 0.0
        %v616 = vand.u32 %v327, 4294901760
        %v617 = vsub.f32 %v327, %v616
        %618 = vmatpush1.msra.mxu0 %v617
        %619 = vmatprep.subr.mxu0 0.0
        %v620 = vand.u32 %v328, 4294901760
        %v621 = vsub.f32 %v328, %v620
        %622 = vmatpush1.msra.mxu0 %v621
        %623 = vmatprep.subr.mxu0 0.0
        %v624 = vand.u32 %v329, 4294901760
        %v625 = vsub.f32 %v329, %v624
        %626 = vmatpush1.msra.mxu0 %v625
        %627 = vmatprep.subr.mxu0 0.0
        %v628 = vand.u32 %v330, 4294901760
        %v629 = vsub.f32 %v330, %v628
        %630 = vmatpush1.msra.mxu0 %v629
        %631 = vmatprep.subr.mxu0 0.0
        %v632 = vand.u32 %v331, 4294901760
        %v633 = vsub.f32 %v331, %v632
        %634 = vmatpush1.msra.mxu0 %v633
        %635 = vmatprep.subr.mxu0 0.0
        %v636 = vand.u32 %v332, 4294901760
        %v637 = vsub.f32 %v332, %v636
        %638 = vmatpush1.msra.mxu0 %v637
        %639 = vmatprep.subr.mxu0 0.0
        %640 = vmatpush1.msra.mxu0 0.0
        %641 = vmatprep.subr.mxu0 0.0
        %642 = vmatpush1.msra.mxu0 0.0
        %643 = vmatprep.subr.mxu0 0.0
        %644 = vmatpush1.msra.mxu0 0.0
        %645 = vmatprep.subr.mxu0 0.0
        %646 = vmatpush1.msra.mxu0 0.0
        %647 = vmatprep.subr.mxu0 0.0
        %648 = vmatpush1.msra.mxu0 0.0
        %649 = vmatprep.subr.mxu0 0.0
        %650 = vmatpush1.msra.mxu0 0.0
        %651 = vmatprep.subr.mxu0 0.0
        %652 = vmatpush1.msra.mxu0 0.0
        %653 = vmatprep.subr.mxu0 0.0
        %654 = vmatpush1.msra.mxu0 0.0
        %655 = vmatprep.subr.mxu0 0.0
        %656 = vmatpush1.msra.mxu0 0.0
        %657 = vmatprep.subr.mxu0 0.0
        %658 = vmatpush1.msra.mxu0 0.0
        %659 = vmatprep.subr.mxu0 0.0
        %660 = vmatpush1.msra.mxu0 0.0
        %661 = vmatprep.subr.mxu0 0.0
        %662 = vmatpush1.msra.mxu0 0.0
        %663 = vmatprep.subr.mxu0 0.0
        %664 = vmatpush1.msra.mxu0 0.0
        %665 = vmatprep.subr.mxu0 0.0
        %666 = vmatpush1.msra.mxu0 0.0
        %667 = vmatprep.subr.mxu0 0.0
        %668 = vmatpush1.msra.mxu0 0.0
        %669 = vmatprep.subr.mxu0 0.0
        %670 = vmatpush1.msra.mxu0 0.0
        %671 = vmatprep.mubr.f32.mxu0 0.0
        %v672 = vand.u32 %v316, 4294901760
        %v673 = vsub.f32 %v316, %v672
        %674 = vmatmul.mubr.f32.gmra.mrb[0].mxu0 %v673
        %v675 = vpop.f32.mrb[0].mxu0
        %v676 = vadd.f32 %v572, %v675
        %v677 = vpop.f32.mrb[0].mxu0
        %678 = vdwg.mxu0
        %679 = vmatprep.subr.mxu0 0.0
        %v680 = vand.u32 %v317, 4294901760
        %681 = vmatpush1.msra.mxu0 %v680
        %682 = vmatprep.subr.mxu0 0.0
        %v683 = vand.u32 %v318, 4294901760
        %684 = vmatpush1.msra.mxu0 %v683
        %685 = vmatprep.subr.mxu0 0.0
        %v686 = vand.u32 %v319, 4294901760
        %687 = vmatpush1.msra.mxu0 %v686
        %688 = vmatprep.subr.mxu0 0.0
        %v689 = vand.u32 %v320, 4294901760
        %690 = vmatpush1.msra.mxu0 %v689
        %691 = vmatprep.subr.mxu0 0.0
        %v692 = vand.u32 %v321, 4294901760
        %693 = vmatpush1.msra.mxu0 %v692
        %694 = vmatprep.subr.mxu0 0.0
        %v695 = vand.u32 %v322, 4294901760
        %696 = vmatpush1.msra.mxu0 %v695
        %697 = vmatprep.subr.mxu0 0.0
        %v698 = vand.u32 %v323, 4294901760
        %699 = vmatpush1.msra.mxu0 %v698
        %700 = vmatprep.subr.mxu0 0.0
        %v701 = vand.u32 %v324, 4294901760
        %702 = vmatpush1.msra.mxu0 %v701
        %703 = vmatprep.subr.mxu0 0.0
        %v704 = vand.u32 %v325, 4294901760
        %705 = vmatpush1.msra.mxu0 %v704
        %706 = vmatprep.subr.mxu0 0.0
        %v707 = vand.u32 %v326, 4294901760
        %708 = vmatpush1.msra.mxu0 %v707
        %709 = vmatprep.subr.mxu0 0.0
        %v710 = vand.u32 %v327, 4294901760
        %711 = vmatpush1.msra.mxu0 %v710
        %712 = vmatprep.subr.mxu0 0.0
        %v713 = vand.u32 %v328, 4294901760
        %714 = vmatpush1.msra.mxu0 %v713
        %715 = vmatprep.subr.mxu0 0.0
        %v716 = vand.u32 %v329, 4294901760
        %717 = vmatpush1.msra.mxu0 %v716
        %718 = vmatprep.subr.mxu0 0.0
        %v719 = vand.u32 %v330, 4294901760
        %720 = vmatpush1.msra.mxu0 %v719
        %721 = vmatprep.subr.mxu0 0.0
        %v722 = vand.u32 %v331, 4294901760
        %723 = vmatpush1.msra.mxu0 %v722
        %724 = vmatprep.subr.mxu0 0.0
        %v725 = vand.u32 %v332, 4294901760
        %726 = vmatpush1.msra.mxu0 %v725
        %727 = vmatprep.subr.mxu0 0.0
        %728 = vmatpush1.msra.mxu0 0.0
        %729 = vmatprep.subr.mxu0 0.0
        %730 = vmatpush1.msra.mxu0 0.0
        %731 = vmatprep.subr.mxu0 0.0
        %732 = vmatpush1.msra.mxu0 0.0
        %733 = vmatprep.subr.mxu0 0.0
        %734 = vmatpush1.msra.mxu0 0.0
        %735 = vmatprep.subr.mxu0 0.0
        %736 = vmatpush1.msra.mxu0 0.0
        %737 = vmatprep.subr.mxu0 0.0
        %738 = vmatpush1.msra.mxu0 0.0
        %739 = vmatprep.subr.mxu0 0.0
        %740 = vmatpush1.msra.mxu0 0.0
        %741 = vmatprep.subr.mxu0 0.0
        %742 = vmatpush1.msra.mxu0 0.0
        %743 = vmatprep.subr.mxu0 0.0
        %744 = vmatpush1.msra.mxu0 0.0
        %745 = vmatprep.subr.mxu0 0.0
        %746 = vmatpush1.msra.mxu0 0.0
        %747 = vmatprep.subr.mxu0 0.0
        %748 = vmatpush1.msra.mxu0 0.0
        %749 = vmatprep.subr.mxu0 0.0
        %750 = vmatpush1.msra.mxu0 0.0
        %751 = vmatprep.subr.mxu0 0.0
        %752 = vmatpush1.msra.mxu0 0.0
        %753 = vmatprep.subr.mxu0 0.0
        %754 = vmatpush1.msra.mxu0 0.0
        %755 = vmatprep.subr.mxu0 0.0
        %756 = vmatpush1.msra.mxu0 0.0
        %757 = vmatprep.subr.mxu0 0.0
        %758 = vmatpush1.msra.mxu0 0.0
        %759 = vmatprep.mubr.f32.mxu0 0.0
        %v760 = vand.u32 %v316, 4294901760
        %v761 = vsub.f32 %v316, %v760
        %v762 = vand.u32 %v761, 4294901760
        %763 = vmatmul.mubr.f32.gmra.mrb[0].mxu0 %v762
        %v764 = vpop.f32.mrb[0].mxu0
        %v765 = vadd.f32 %v676, %v764
        %v766 = vpop.f32.mrb[0].mxu0
        %767 = vdwg.mxu0
        %768 = vmatprep.subr.mxu0 0.0
        %v769 = vand.u32 %v317, 4294901760
        %v770 = vsub.f32 %v317, %v769
        %v771 = vand.u32 %v770, 4294901760
        %772 = vmatpush1.msra.mxu0 %v771
        %773 = vmatprep.subr.mxu0 0.0
        %v774 = vand.u32 %v318, 4294901760
        %v775 = vsub.f32 %v318, %v774
        %v776 = vand.u32 %v775, 4294901760
        %777 = vmatpush1.msra.mxu0 %v776
        %778 = vmatprep.subr.mxu0 0.0
        %v779 = vand.u32 %v319, 4294901760
        %v780 = vsub.f32 %v319, %v779
        %v781 = vand.u32 %v780, 4294901760
        %782 = vmatpush1.msra.mxu0 %v781
        %783 = vmatprep.subr.mxu0 0.0
        %v784 = vand.u32 %v320, 4294901760
        %v785 = vsub.f32 %v320, %v784
        %v786 = vand.u32 %v785, 4294901760
        %787 = vmatpush1.msra.mxu0 %v786
        %788 = vmatprep.subr.mxu0 0.0
        %v789 = vand.u32 %v321, 4294901760
        %v790 = vsub.f32 %v321, %v789
        %v791 = vand.u32 %v790, 4294901760
        %792 = vmatpush1.msra.mxu0 %v791
        %793 = vmatprep.subr.mxu0 0.0
        %v794 = vand.u32 %v322, 4294901760
        %v795 = vsub.f32 %v322, %v794
        %v796 = vand.u32 %v795, 4294901760
        %797 = vmatpush1.msra.mxu0 %v796
        %798 = vmatprep.subr.mxu0 0.0
        %v799 = vand.u32 %v323, 4294901760
        %v800 = vsub.f32 %v323, %v799
        %v801 = vand.u32 %v800, 4294901760
        %802 = vmatpush1.msra.mxu0 %v801
        %803 = vmatprep.subr.mxu0 0.0
        %v804 = vand.u32 %v324, 4294901760
        %v805 = vsub.f32 %v324, %v804
        %v806 = vand.u32 %v805, 4294901760
        %807 = vmatpush1.msra.mxu0 %v806
        %808 = vmatprep.subr.mxu0 0.0
        %v809 = vand.u32 %v325, 4294901760
        %v810 = vsub.f32 %v325, %v809
        %v811 = vand.u32 %v810, 4294901760
        %812 = vmatpush1.msra.mxu0 %v811
        %813 = vmatprep.subr.mxu0 0.0
        %v814 = vand.u32 %v326, 4294901760
        %v815 = vsub.f32 %v326, %v814
        %v816 = vand.u32 %v815, 4294901760
        %817 = vmatpush1.msra.mxu0 %v816
        %818 = vmatprep.subr.mxu0 0.0
        %v819 = vand.u32 %v327, 4294901760
        %v820 = vsub.f32 %v327, %v819
        %v821 = vand.u32 %v820, 4294901760
        %822 = vmatpush1.msra.mxu0 %v821
        %823 = vmatprep.subr.mxu0 0.0
        %v824 = vand.u32 %v328, 4294901760
        %v825 = vsub.f32 %v328, %v824
        %v826 = vand.u32 %v825, 4294901760
        %827 = vmatpush1.msra.mxu0 %v826
        %828 = vmatprep.subr.mxu0 0.0
        %v829 = vand.u32 %v329, 4294901760
        %v830 = vsub.f32 %v329, %v829
        %v831 = vand.u32 %v830, 4294901760
        %832 = vmatpush1.msra.mxu0 %v831
        %833 = vmatprep.subr.mxu0 0.0
        %v834 = vand.u32 %v330, 4294901760
        %v835 = vsub.f32 %v330, %v834
        %v836 = vand.u32 %v835, 4294901760
        %837 = vmatpush1.msra.mxu0 %v836
        %838 = vmatprep.subr.mxu0 0.0
        %v839 = vand.u32 %v331, 4294901760
        %v840 = vsub.f32 %v331, %v839
        %v841 = vand.u32 %v840, 4294901760
        %842 = vmatpush1.msra.mxu0 %v841
        %843 = vmatprep.subr.mxu0 0.0
        %v844 = vand.u32 %v332, 4294901760
        %v845 = vsub.f32 %v332, %v844
        %v846 = vand.u32 %v845, 4294901760
        %847 = vmatpush1.msra.mxu0 %v846
        %848 = vmatprep.subr.mxu0 0.0
        %849 = vmatpush1.msra.mxu0 0.0
        %850 = vmatprep.subr.mxu0 0.0
        %851 = vmatpush1.msra.mxu0 0.0
        %852 = vmatprep.subr.mxu0 0.0
        %853 = vmatpush1.msra.mxu0 0.0
        %854 = vmatprep.subr.mxu0 0.0
        %855 = vmatpush1.msra.mxu0 0.0
        %856 = vmatprep.subr.mxu0 0.0
        %857 = vmatpush1.msra.mxu0 0.0
        %858 = vmatprep.subr.mxu0 0.0
        %859 = vmatpush1.msra.mxu0 0.0
        %860 = vmatprep.subr.mxu0 0.0
        %861 = vmatpush1.msra.mxu0 0.0
        %862 = vmatprep.subr.mxu0 0.0
        %863 = vmatpush1.msra.mxu0 0.0
        %864 = vmatprep.subr.mxu0 0.0
        %865 = vmatpush1.msra.mxu0 0.0
        %866 = vmatprep.subr.mxu0 0.0
        %867 = vmatpush1.msra.mxu0 0.0
        %868 = vmatprep.subr.mxu0 0.0
        %869 = vmatpush1.msra.mxu0 0.0
        %870 = vmatprep.subr.mxu0 0.0
        %871 = vmatpush1.msra.mxu0 0.0
        %872 = vmatprep.subr.mxu0 0.0
        %873 = vmatpush1.msra.mxu0 0.0
        %874 = vmatprep.subr.mxu0 0.0
        %875 = vmatpush1.msra.mxu0 0.0
        %876 = vmatprep.subr.mxu0 0.0
        %877 = vmatpush1.msra.mxu0 0.0
        %878 = vmatprep.subr.mxu0 0.0
        %879 = vmatpush1.msra.mxu0 0.0
        %880 = vmatprep.mubr.f32.mxu0 0.0
        %v881 = vand.u32 %v316, 4294901760
        %882 = vmatmul.mubr.f32.gmra.mrb[0].mxu0 %v881
        %v883 = vpop.f32.mrb[0].mxu0
        %v884 = vadd.f32 %v765, %v883
        %v885 = vpop.f32.mrb[0].mxu0
        %886 = vdwg.mxu0
        %887 = vmatprep.subr.mxu0 0.0
        %v888 = vand.u32 %v317, 4294901760
        %889 = vmatpush1.msra.mxu0 %v888
        %890 = vmatprep.subr.mxu0 0.0
        %v891 = vand.u32 %v318, 4294901760
        %892 = vmatpush1.msra.mxu0 %v891
        %893 = vmatprep.subr.mxu0 0.0
        %v894 = vand.u32 %v319, 4294901760
        %895 = vmatpush1.msra.mxu0 %v894
        %896 = vmatprep.subr.mxu0 0.0
        %v897 = vand.u32 %v320, 4294901760
        %898 = vmatpush1.msra.mxu0 %v897
        %899 = vmatprep.subr.mxu0 0.0
        %v900 = vand.u32 %v321, 4294901760
        %901 = vmatpush1.msra.mxu0 %v900
        %902 = vmatprep.subr.mxu0 0.0
        %v903 = vand.u32 %v322, 4294901760
        %904 = vmatpush1.msra.mxu0 %v903
        %905 = vmatprep.subr.mxu0 0.0
        %v906 = vand.u32 %v323, 4294901760
        %907 = vmatpush1.msra.mxu0 %v906
        %908 = vmatprep.subr.mxu0 0.0
        %v909 = vand.u32 %v324, 4294901760
        %910 = vmatpush1.msra.mxu0 %v909
        %911 = vmatprep.subr.mxu0 0.0
        %v912 = vand.u32 %v325, 4294901760
        %913 = vmatpush1.msra.mxu0 %v912
        %914 = vmatprep.subr.mxu0 0.0
        %v915 = vand.u32 %v326, 4294901760
        %916 = vmatpush1.msra.mxu0 %v915
        %917 = vmatprep.subr.mxu0 0.0
        %v918 = vand.u32 %v327, 4294901760
        %919 = vmatpush1.msra.mxu0 %v918
        %920 = vmatprep.subr.mxu0 0.0
        %v921 = vand.u32 %v328, 4294901760
        %922 = vmatpush1.msra.mxu0 %v921
        %923 = vmatprep.subr.mxu0 0.0
        %v924 = vand.u32 %v329, 4294901760
        %925 = vmatpush1.msra.mxu0 %v924
        %926 = vmatprep.subr.mxu0 0.0
        %v927 = vand.u32 %v330, 4294901760
        %928 = vmatpush1.msra.mxu0 %v927
        %929 = vmatprep.subr.mxu0 0.0
        %v930 = vand.u32 %v331, 4294901760
        %931 = vmatpush1.msra.mxu0 %v930
        %932 = vmatprep.subr.mxu0 0.0
        %v933 = vand.u32 %v332, 4294901760
        %934 = vmatpush1.msra.mxu0 %v933
        %935 = vmatprep.subr.mxu0 0.0
        %936 = vmatpush1.msra.mxu0 0.0
        %937 = vmatprep.subr.mxu0 0.0
        %938 = vmatpush1.msra.mxu0 0.0
        %939 = vmatprep.subr.mxu0 0.0
        %940 = vmatpush1.msra.mxu0 0.0
        %941 = vmatprep.subr.mxu0 0.0
        %942 = vmatpush1.msra.mxu0 0.0
        %943 = vmatprep.subr.mxu0 0.0
        %944 = vmatpush1.msra.mxu0 0.0
        %945 = vmatprep.subr.mxu0 0.0
        %946 = vmatpush1.msra.mxu0 0.0
        %947 = vmatprep.subr.mxu0 0.0
        %948 = vmatpush1.msra.mxu0 0.0
        %949 = vmatprep.subr.mxu0 0.0
        %950 = vmatpush1.msra.mxu0 0.0
        %951 = vmatprep.subr.mxu0 0.0
        %952 = vmatpush1.msra.mxu0 0.0
        %953 = vmatprep.subr.mxu0 0.0
        %954 = vmatpush1.msra.mxu0 0.0
        %955 = vmatprep.subr.mxu0 0.0
        %956 = vmatpush1.msra.mxu0 0.0
        %957 = vmatprep.subr.mxu0 0.0
        %958 = vmatpush1.msra.mxu0 0.0
        %959 = vmatprep.subr.mxu0 0.0
        %960 = vmatpush1.msra.mxu0 0.0
        %961 = vmatprep.subr.mxu0 0.0
        %962 = vmatpush1.msra.mxu0 0.0
        %963 = vmatprep.subr.mxu0 0.0
        %964 = vmatpush1.msra.mxu0 0.0
        %965 = vmatprep.subr.mxu0 0.0
        %966 = vmatpush1.msra.mxu0 0.0
        %967 = vmatprep.mubr.f32.mxu0 0.0
        %v968 = vand.u32 %v316, 4294901760
        %969 = vmatmul.mubr.f32.gmra.mrb[0].mxu0 %v968
        %v970 = vpop.f32.mrb[0].mxu0
        %v971 = vadd.f32 %v884, %v970
        %v972 = vpop.f32.mrb[0].mxu0
        %973 = vdwg.mxu0
        %vm974 = vcmask 97280
        %v976 = vsel %vm974, %v290, 0
        %vm978 = vcmask 1043456
        %v980 = vsel %vm978, %v292, 0
        %982 = vmatprep.subr.mxu0 0.0
        %v983 = vand.u32 %v291, 4294901760
        %984 = vmatpush1.msra.mxu0 %v983
        %985 = vmatprep.subr.mxu0 0.0
        %v986 = vand.u32 %v980, 4294901760
        %987 = vmatpush1.msra.mxu0 %v986
        %988 = vmatprep.subr.mxu0 0.0
        %989 = vmatpush1.msra.mxu0 0.0
        %990 = vmatprep.subr.mxu0 0.0
        %991 = vmatpush1.msra.mxu0 0.0
        %992 = vmatprep.subr.mxu0 0.0
        %993 = vmatpush1.msra.mxu0 0.0
        %994 = vmatprep.subr.mxu0 0.0
        %995 = vmatpush1.msra.mxu0 0.0
        %996 = vmatprep.subr.mxu0 0.0
        %997 = vmatpush1.msra.mxu0 0.0
        %998 = vmatprep.subr.mxu0 0.0
        %999 = vmatpush1.msra.mxu0 0.0
        %1000 = vmatprep.subr.mxu0 0.0
        %1001 = vmatpush1.msra.mxu0 0.0
        %1002 = vmatprep.subr.mxu0 0.0
        %1003 = vmatpush1.msra.mxu0 0.0
        %1004 = vmatprep.subr.mxu0 0.0
        %1005 = vmatpush1.msra.mxu0 0.0
        %1006 = vmatprep.subr.mxu0 0.0
        %1007 = vmatpush1.msra.mxu0 0.0
        %1008 = vmatprep.subr.mxu0 0.0
        %1009 = vmatpush1.msra.mxu0 0.0
        %1010 = vmatprep.subr.mxu0 0.0
        %1011 = vmatpush1.msra.mxu0 0.0
        %1012 = vmatprep.subr.mxu0 0.0
        %1013 = vmatpush1.msra.mxu0 0.0
        %1014 = vmatprep.subr.mxu0 0.0
        %1015 = vmatpush1.msra.mxu0 0.0
        %1016 = vmatprep.subr.mxu0 0.0
        %1017 = vmatpush1.msra.mxu0 0.0
        %1018 = vmatprep.subr.mxu0 0.0
        %1019 = vmatpush1.msra.mxu0 0.0
        %1020 = vmatprep.subr.mxu0 0.0
        %1021 = vmatpush1.msra.mxu0 0.0
        %1022 = vmatprep.subr.mxu0 0.0
        %1023 = vmatpush1.msra.mxu0 0.0
        %1024 = vmatprep.subr.mxu0 0.0
        %1025 = vmatpush1.msra.mxu0 0.0
        %1026 = vmatprep.subr.mxu0 0.0
        %1027 = vmatpush1.msra.mxu0 0.0
        %1028 = vmatprep.subr.mxu0 0.0
        %1029 = vmatpush1.msra.mxu0 0.0
        %1030 = vmatprep.subr.mxu0 0.0
        %1031 = vmatpush1.msra.mxu0 0.0
        %1032 = vmatprep.subr.mxu0 0.0
        %1033 = vmatpush1.msra.mxu0 0.0
        %1034 = vmatprep.subr.mxu0 0.0
        %1035 = vmatpush1.msra.mxu0 0.0
        %1036 = vmatprep.subr.mxu0 0.0
        %1037 = vmatpush1.msra.mxu0 0.0
        %1038 = vmatprep.subr.mxu0 0.0
        %1039 = vmatpush1.msra.mxu0 0.0
        %1040 = vmatprep.subr.mxu0 0.0
        %1041 = vmatpush1.msra.mxu0 0.0
        %1042 = vmatprep.subr.mxu0 0.0
        %1043 = vmatpush1.msra.mxu0 0.0
        %1044 = vmatprep.subr.mxu0 0.0
        %1045 = vmatpush1.msra.mxu0 0.0
        %1046 = vmatprep.subr.mxu0 0.0
        %1047 = vmatpush1.msra.mxu0 0.0
        %1048 = vmatprep.mubr.f32.mxu0 0.0
        %v1049 = vand.u32 %v976, 4294901760
        %v1050 = vsub.f32 %v976, %v1049
        %v1051 = vand.u32 %v1050, 4294901760
        %v1052 = vsub.f32 %v1050, %v1051
        %v1053 = vand.u32 %v1052, 4294901760
        %1054 = vmatmul.mubr.f32.gmra.mrb[0].mxu0 %v1053
        %v1055 = vpop.f32.mrb[0].mxu0
        %v1056 = vadd.f32 %v971, %v1055
        %v1057 = vpop.f32.mrb[0].mxu0
        %1058 = vdwg.mxu0
        %1059 = vmatprep.subr.mxu0 0.0
        %v1060 = vand.u32 %v291, 4294901760
        %v1061 = vsub.f32 %v291, %v1060
        %v1062 = vand.u32 %v1061, 4294901760
        %v1063 = vsub.f32 %v1061, %v1062
        %v1064 = vand.u32 %v1063, 4294901760
        %1065 = vmatpush1.msra.mxu0 %v1064
        %1066 = vmatprep.subr.mxu0 0.0
        %v1067 = vand.u32 %v980, 4294901760
        %v1068 = vsub.f32 %v980, %v1067
        %v1069 = vand.u32 %v1068, 4294901760
        %v1070 = vsub.f32 %v1068, %v1069
        %v1071 = vand.u32 %v1070, 4294901760
        %1072 = vmatpush1.msra.mxu0 %v1071
        %1073 = vmatprep.subr.mxu0 0.0
        %1074 = vmatpush1.msra.mxu0 0.0
        %1075 = vmatprep.subr.mxu0 0.0
        %1076 = vmatpush1.msra.mxu0 0.0
        %1077 = vmatprep.subr.mxu0 0.0
        %1078 = vmatpush1.msra.mxu0 0.0
        %1079 = vmatprep.subr.mxu0 0.0
        %1080 = vmatpush1.msra.mxu0 0.0
        %1081 = vmatprep.subr.mxu0 0.0
        %1082 = vmatpush1.msra.mxu0 0.0
        %1083 = vmatprep.subr.mxu0 0.0
        %1084 = vmatpush1.msra.mxu0 0.0
        %1085 = vmatprep.subr.mxu0 0.0
        %1086 = vmatpush1.msra.mxu0 0.0
        %1087 = vmatprep.subr.mxu0 0.0
        %1088 = vmatpush1.msra.mxu0 0.0
        %1089 = vmatprep.subr.mxu0 0.0
        %1090 = vmatpush1.msra.mxu0 0.0
        %1091 = vmatprep.subr.mxu0 0.0
        %1092 = vmatpush1.msra.mxu0 0.0
        %1093 = vmatprep.subr.mxu0 0.0
        %1094 = vmatpush1.msra.mxu0 0.0
        %1095 = vmatprep.subr.mxu0 0.0
        %1096 = vmatpush1.msra.mxu0 0.0
        %1097 = vmatprep.subr.mxu0 0.0
        %1098 = vmatpush1.msra.mxu0 0.0
        %1099 = vmatprep.subr.mxu0 0.0
        %1100 = vmatpush1.msra.mxu0 0.0
        %1101 = vmatprep.subr.mxu0 0.0
        %1102 = vmatpush1.msra.mxu0 0.0
        %1103 = vmatprep.subr.mxu0 0.0
        %1104 = vmatpush1.msra.mxu0 0.0
        %1105 = vmatprep.subr.mxu0 0.0
        %1106 = vmatpush1.msra.mxu0 0.0
        %1107 = vmatprep.subr.mxu0 0.0
        %1108 = vmatpush1.msra.mxu0 0.0
        %1109 = vmatprep.subr.mxu0 0.0
        %1110 = vmatpush1.msra.mxu0 0.0
        %1111 = vmatprep.subr.mxu0 0.0
        %1112 = vmatpush1.msra.mxu0 0.0
        %1113 = vmatprep.subr.mxu0 0.0
        %1114 = vmatpush1.msra.mxu0 0.0
        %1115 = vmatprep.subr.mxu0 0.0
        %1116 = vmatpush1.msra.mxu0 0.0
        %1117 = vmatprep.subr.mxu0 0.0
        %1118 = vmatpush1.msra.mxu0 0.0
        %1119 = vmatprep.subr.mxu0 0.0
        %1120 = vmatpush1.msra.mxu0 0.0
        %1121 = vmatprep.subr.mxu0 0.0
        %1122 = vmatpush1.msra.mxu0 0.0
        %1123 = vmatprep.subr.mxu0 0.0
        %1124 = vmatpush1.msra.mxu0 0.0
        %1125 = vmatprep.subr.mxu0 0.0
        %1126 = vmatpush1.msra.mxu0 0.0
        %1127 = vmatprep.subr.mxu0 0.0
        %1128 = vmatpush1.msra.mxu0 0.0
        %1129 = vmatprep.subr.mxu0 0.0
        %1130 = vmatpush1.msra.mxu0 0.0
        %1131 = vmatprep.subr.mxu0 0.0
        %1132 = vmatpush1.msra.mxu0 0.0
        %1133 = vmatprep.mubr.f32.mxu0 0.0
        %v1134 = vand.u32 %v976, 4294901760
        %1135 = vmatmul.mubr.f32.gmra.mrb[0].mxu0 %v1134
        %v1136 = vpop.f32.mrb[0].mxu0
        %v1137 = vadd.f32 %v1056, %v1136
        %v1138 = vpop.f32.mrb[0].mxu0
        %1139 = vdwg.mxu0
        %1140 = vmatprep.subr.mxu0 0.0
        %v1141 = vand.u32 %v291, 4294901760
        %v1142 = vsub.f32 %v291, %v1141
        %1143 = vmatpush1.msra.mxu0 %v1142
        %1144 = vmatprep.subr.mxu0 0.0
        %v1145 = vand.u32 %v980, 4294901760
        %v1146 = vsub.f32 %v980, %v1145
        %1147 = vmatpush1.msra.mxu0 %v1146
        %1148 = vmatprep.subr.mxu0 0.0
        %1149 = vmatpush1.msra.mxu0 0.0
        %1150 = vmatprep.subr.mxu0 0.0
        %1151 = vmatpush1.msra.mxu0 0.0
        %1152 = vmatprep.subr.mxu0 0.0
        %1153 = vmatpush1.msra.mxu0 0.0
        %1154 = vmatprep.subr.mxu0 0.0
        %1155 = vmatpush1.msra.mxu0 0.0
        %1156 = vmatprep.subr.mxu0 0.0
        %1157 = vmatpush1.msra.mxu0 0.0
        %1158 = vmatprep.subr.mxu0 0.0
        %1159 = vmatpush1.msra.mxu0 0.0
        %1160 = vmatprep.subr.mxu0 0.0
        %1161 = vmatpush1.msra.mxu0 0.0
        %1162 = vmatprep.subr.mxu0 0.0
        %1163 = vmatpush1.msra.mxu0 0.0
        %1164 = vmatprep.subr.mxu0 0.0
        %1165 = vmatpush1.msra.mxu0 0.0
        %1166 = vmatprep.subr.mxu0 0.0
        %1167 = vmatpush1.msra.mxu0 0.0
        %1168 = vmatprep.subr.mxu0 0.0
        %1169 = vmatpush1.msra.mxu0 0.0
        %1170 = vmatprep.subr.mxu0 0.0
        %1171 = vmatpush1.msra.mxu0 0.0
        %1172 = vmatprep.subr.mxu0 0.0
        %1173 = vmatpush1.msra.mxu0 0.0
        %1174 = vmatprep.subr.mxu0 0.0
        %1175 = vmatpush1.msra.mxu0 0.0
        %1176 = vmatprep.subr.mxu0 0.0
        %1177 = vmatpush1.msra.mxu0 0.0
        %1178 = vmatprep.subr.mxu0 0.0
        %1179 = vmatpush1.msra.mxu0 0.0
        %1180 = vmatprep.subr.mxu0 0.0
        %1181 = vmatpush1.msra.mxu0 0.0
        %1182 = vmatprep.subr.mxu0 0.0
        %1183 = vmatpush1.msra.mxu0 0.0
        %1184 = vmatprep.subr.mxu0 0.0
        %1185 = vmatpush1.msra.mxu0 0.0
        %1186 = vmatprep.subr.mxu0 0.0
        %1187 = vmatpush1.msra.mxu0 0.0
        %1188 = vmatprep.subr.mxu0 0.0
        %1189 = vmatpush1.msra.mxu0 0.0
        %1190 = vmatprep.subr.mxu0 0.0
        %1191 = vmatpush1.msra.mxu0 0.0
        %1192 = vmatprep.subr.mxu0 0.0
        %1193 = vmatpush1.msra.mxu0 0.0
        %1194 = vmatprep.subr.mxu0 0.0
        %1195 = vmatpush1.msra.mxu0 0.0
        %1196 = vmatprep.subr.mxu0 0.0
        %1197 = vmatpush1.msra.mxu0 0.0
        %1198 = vmatprep.subr.mxu0 0.0
        %1199 = vmatpush1.msra.mxu0 0.0
        %1200 = vmatprep.subr.mxu0 0.0
        %1201 = vmatpush1.msra.mxu0 0.0
        %1202 = vmatprep.subr.mxu0 0.0
        %1203 = vmatpush1.msra.mxu0 0.0
        %1204 = vmatprep.subr.mxu0 0.0
        %1205 = vmatpush1.msra.mxu0 0.0
        %1206 = vmatprep.subr.mxu0 0.0
        %1207 = vmatpush1.msra.mxu0 0.0
        %1208 = vmatprep.mubr.f32.mxu0 0.0
        %v1209 = vand.u32 %v976, 4294901760
        %v1210 = vsub.f32 %v976, %v1209
        %1211 = vmatmul.mubr.f32.gmra.mrb[0].mxu0 %v1210
        %v1212 = vpop.f32.mrb[0].mxu0
        %v1213 = vadd.f32 %v1137, %v1212
        %v1214 = vpop.f32.mrb[0].mxu0
        %1215 = vdwg.mxu0
        %1216 = vmatprep.subr.mxu0 0.0
        %v1217 = vand.u32 %v291, 4294901760
        %1218 = vmatpush1.msra.mxu0 %v1217
        %1219 = vmatprep.subr.mxu0 0.0
        %v1220 = vand.u32 %v980, 4294901760
        %1221 = vmatpush1.msra.mxu0 %v1220
        %1222 = vmatprep.subr.mxu0 0.0
        %1223 = vmatpush1.msra.mxu0 0.0
        %1224 = vmatprep.subr.mxu0 0.0
        %1225 = vmatpush1.msra.mxu0 0.0
        %1226 = vmatprep.subr.mxu0 0.0
        %1227 = vmatpush1.msra.mxu0 0.0
        %1228 = vmatprep.subr.mxu0 0.0
        %1229 = vmatpush1.msra.mxu0 0.0
        %1230 = vmatprep.subr.mxu0 0.0
        %1231 = vmatpush1.msra.mxu0 0.0
        %1232 = vmatprep.subr.mxu0 0.0
        %1233 = vmatpush1.msra.mxu0 0.0
        %1234 = vmatprep.subr.mxu0 0.0
        %1235 = vmatpush1.msra.mxu0 0.0
        %1236 = vmatprep.subr.mxu0 0.0
        %1237 = vmatpush1.msra.mxu0 0.0
        %1238 = vmatprep.subr.mxu0 0.0
        %1239 = vmatpush1.msra.mxu0 0.0
        %1240 = vmatprep.subr.mxu0 0.0
        %1241 = vmatpush1.msra.mxu0 0.0
        %1242 = vmatprep.subr.mxu0 0.0
        %1243 = vmatpush1.msra.mxu0 0.0
        %1244 = vmatprep.subr.mxu0 0.0
        %1245 = vmatpush1.msra.mxu0 0.0
        %1246 = vmatprep.subr.mxu0 0.0
        %1247 = vmatpush1.msra.mxu0 0.0
        %1248 = vmatprep.subr.mxu0 0.0
        %1249 = vmatpush1.msra.mxu0 0.0
        %1250 = vmatprep.subr.mxu0 0.0
        %1251 = vmatpush1.msra.mxu0 0.0
        %1252 = vmatprep.subr.mxu0 0.0
        %1253 = vmatpush1.msra.mxu0 0.0
        %1254 = vmatprep.subr.mxu0 0.0
        %1255 = vmatpush1.msra.mxu0 0.0
        %1256 = vmatprep.subr.mxu0 0.0
        %1257 = vmatpush1.msra.mxu0 0.0
        %1258 = vmatprep.subr.mxu0 0.0
        %1259 = vmatpush1.msra.mxu0 0.0
        %1260 = vmatprep.subr.mxu0 0.0
        %1261 = vmatpush1.msra.mxu0 0.0
        %1262 = vmatprep.subr.mxu0 0.0
        %1263 = vmatpush1.msra.mxu0 0.0
        %1264 = vmatprep.subr.mxu0 0.0
        %1265 = vmatpush1.msra.mxu0 0.0
        %1266 = vmatprep.subr.mxu0 0.0
        %1267 = vmatpush1.msra.mxu0 0.0
        %1268 = vmatprep.subr.mxu0 0.0
        %1269 = vmatpush1.msra.mxu0 0.0
        %1270 = vmatprep.subr.mxu0 0.0
        %1271 = vmatpush1.msra.mxu0 0.0
        %1272 = vmatprep.subr.mxu0 0.0
        %1273 = vmatpush1.msra.mxu0 0.0
        %1274 = vmatprep.subr.mxu0 0.0
        %1275 = vmatpush1.msra.mxu0 0.0
        %1276 = vmatprep.subr.mxu0 0.0
        %1277 = vmatpush1.msra.mxu0 0.0
        %1278 = vmatprep.subr.mxu0 0.0
        %1279 = vmatpush1.msra.mxu0 0.0
        %1280 = vmatprep.subr.mxu0 0.0
        %1281 = vmatpush1.msra.mxu0 0.0
        %1282 = vmatprep.mubr.f32.mxu0 0.0
        %v1283 = vand.u32 %v976, 4294901760
        %v1284 = vsub.f32 %v976, %v1283
        %v1285 = vand.u32 %v1284, 4294901760
        %1286 = vmatmul.mubr.f32.gmra.mrb[0].mxu0 %v1285
        %v1287 = vpop.f32.mrb[0].mxu0
        %v1288 = vadd.f32 %v1213, %v1287
        %v1289 = vpop.f32.mrb[0].mxu0
        %1290 = vdwg.mxu0
        %1291 = vmatprep.subr.mxu0 0.0
        %v1292 = vand.u32 %v291, 4294901760
        %v1293 = vsub.f32 %v291, %v1292
        %v1294 = vand.u32 %v1293, 4294901760
        %1295 = vmatpush1.msra.mxu0 %v1294
        %1296 = vmatprep.subr.mxu0 0.0
        %v1297 = vand.u32 %v980, 4294901760
        %v1298 = vsub.f32 %v980, %v1297
        %v1299 = vand.u32 %v1298, 4294901760
        %1300 = vmatpush1.msra.mxu0 %v1299
        %1301 = vmatprep.subr.mxu0 0.0
        %1302 = vmatpush1.msra.mxu0 0.0
        %1303 = vmatprep.subr.mxu0 0.0
        %1304 = vmatpush1.msra.mxu0 0.0
        %1305 = vmatprep.subr.mxu0 0.0
        %1306 = vmatpush1.msra.mxu0 0.0
        %1307 = vmatprep.subr.mxu0 0.0
        %1308 = vmatpush1.msra.mxu0 0.0
        %1309 = vmatprep.subr.mxu0 0.0
        %1310 = vmatpush1.msra.mxu0 0.0
        %1311 = vmatprep.subr.mxu0 0.0
        %1312 = vmatpush1.msra.mxu0 0.0
        %1313 = vmatprep.subr.mxu0 0.0
        %1314 = vmatpush1.msra.mxu0 0.0
        %1315 = vmatprep.subr.mxu0 0.0
        %1316 = vmatpush1.msra.mxu0 0.0
        %1317 = vmatprep.subr.mxu0 0.0
        %1318 = vmatpush1.msra.mxu0 0.0
        %1319 = vmatprep.subr.mxu0 0.0
        %1320 = vmatpush1.msra.mxu0 0.0
        %1321 = vmatprep.subr.mxu0 0.0
        %1322 = vmatpush1.msra.mxu0 0.0
        %1323 = vmatprep.subr.mxu0 0.0
        %1324 = vmatpush1.msra.mxu0 0.0
        %1325 = vmatprep.subr.mxu0 0.0
        %1326 = vmatpush1.msra.mxu0 0.0
        %1327 = vmatprep.subr.mxu0 0.0
        %1328 = vmatpush1.msra.mxu0 0.0
        %1329 = vmatprep.subr.mxu0 0.0
        %1330 = vmatpush1.msra.mxu0 0.0
        %1331 = vmatprep.subr.mxu0 0.0
        %1332 = vmatpush1.msra.mxu0 0.0
        %1333 = vmatprep.subr.mxu0 0.0
        %1334 = vmatpush1.msra.mxu0 0.0
        %1335 = vmatprep.subr.mxu0 0.0
        %1336 = vmatpush1.msra.mxu0 0.0
        %1337 = vmatprep.subr.mxu0 0.0
        %1338 = vmatpush1.msra.mxu0 0.0
        %1339 = vmatprep.subr.mxu0 0.0
        %1340 = vmatpush1.msra.mxu0 0.0
        %1341 = vmatprep.subr.mxu0 0.0
        %1342 = vmatpush1.msra.mxu0 0.0
        %1343 = vmatprep.subr.mxu0 0.0
        %1344 = vmatpush1.msra.mxu0 0.0
        %1345 = vmatprep.subr.mxu0 0.0
        %1346 = vmatpush1.msra.mxu0 0.0
        %1347 = vmatprep.subr.mxu0 0.0
        %1348 = vmatpush1.msra.mxu0 0.0
        %1349 = vmatprep.subr.mxu0 0.0
        %1350 = vmatpush1.msra.mxu0 0.0
        %1351 = vmatprep.subr.mxu0 0.0
        %1352 = vmatpush1.msra.mxu0 0.0
        %1353 = vmatprep.subr.mxu0 0.0
        %1354 = vmatpush1.msra.mxu0 0.0
        %1355 = vmatprep.subr.mxu0 0.0
        %1356 = vmatpush1.msra.mxu0 0.0
        %1357 = vmatprep.subr.mxu0 0.0
        %1358 = vmatpush1.msra.mxu0 0.0
        %1359 = vmatprep.subr.mxu0 0.0
        %1360 = vmatpush1.msra.mxu0 0.0
        %1361 = vmatprep.mubr.f32.mxu0 0.0
        %v1362 = vand.u32 %v976, 4294901760
        %1363 = vmatmul.mubr.f32.gmra.mrb[0].mxu0 %v1362
        %v1364 = vpop.f32.mrb[0].mxu0
        %v1365 = vadd.f32 %v1288, %v1364
        %v1366 = vpop.f32.mrb[0].mxu0
        %1367 = vdwg.mxu0
        %1368 = vmatprep.subr.mxu0 0.0
        %v1369 = vand.u32 %v291, 4294901760
        %1370 = vmatpush1.msra.mxu0 %v1369
        %1371 = vmatprep.subr.mxu0 0.0
        %v1372 = vand.u32 %v980, 4294901760
        %1373 = vmatpush1.msra.mxu0 %v1372
        %1374 = vmatprep.subr.mxu0 0.0
        %1375 = vmatpush1.msra.mxu0 0.0
        %1376 = vmatprep.subr.mxu0 0.0
        %1377 = vmatpush1.msra.mxu0 0.0
        %1378 = vmatprep.subr.mxu0 0.0
        %1379 = vmatpush1.msra.mxu0 0.0
        %1380 = vmatprep.subr.mxu0 0.0
        %1381 = vmatpush1.msra.mxu0 0.0
        %1382 = vmatprep.subr.mxu0 0.0
        %1383 = vmatpush1.msra.mxu0 0.0
        %1384 = vmatprep.subr.mxu0 0.0
        %1385 = vmatpush1.msra.mxu0 0.0
        %1386 = vmatprep.subr.mxu0 0.0
        %1387 = vmatpush1.msra.mxu0 0.0
        %1388 = vmatprep.subr.mxu0 0.0
        %1389 = vmatpush1.msra.mxu0 0.0
        %1390 = vmatprep.subr.mxu0 0.0
        %1391 = vmatpush1.msra.mxu0 0.0
        %1392 = vmatprep.subr.mxu0 0.0
        %1393 = vmatpush1.msra.mxu0 0.0
        %1394 = vmatprep.subr.mxu0 0.0
        %1395 = vmatpush1.msra.mxu0 0.0
        %1396 = vmatprep.subr.mxu0 0.0
        %1397 = vmatpush1.msra.mxu0 0.0
        %1398 = vmatprep.subr.mxu0 0.0
        %1399 = vmatpush1.msra.mxu0 0.0
        %1400 = vmatprep.subr.mxu0 0.0
        %1401 = vmatpush1.msra.mxu0 0.0
        %1402 = vmatprep.subr.mxu0 0.0
        %1403 = vmatpush1.msra.mxu0 0.0
        %1404 = vmatprep.subr.mxu0 0.0
        %1405 = vmatpush1.msra.mxu0 0.0
        %1406 = vmatprep.subr.mxu0 0.0
        %1407 = vmatpush1.msra.mxu0 0.0
        %1408 = vmatprep.subr.mxu0 0.0
        %1409 = vmatpush1.msra.mxu0 0.0
        %1410 = vmatprep.subr.mxu0 0.0
        %1411 = vmatpush1.msra.mxu0 0.0
        %1412 = vmatprep.subr.mxu0 0.0
        %1413 = vmatpush1.msra.mxu0 0.0
        %1414 = vmatprep.subr.mxu0 0.0
        %1415 = vmatpush1.msra.mxu0 0.0
        %1416 = vmatprep.subr.mxu0 0.0
        %1417 = vmatpush1.msra.mxu0 0.0
        %1418 = vmatprep.subr.mxu0 0.0
        %1419 = vmatpush1.msra.mxu0 0.0
        %1420 = vmatprep.subr.mxu0 0.0
        %1421 = vmatpush1.msra.mxu0 0.0
        %1422 = vmatprep.subr.mxu0 0.0
        %1423 = vmatpush1.msra.mxu0 0.0
        %1424 = vmatprep.subr.mxu0 0.0
        %1425 = vmatpush1.msra.mxu0 0.0
        %1426 = vmatprep.subr.mxu0 0.0
        %1427 = vmatpush1.msra.mxu0 0.0
        %1428 = vmatprep.subr.mxu0 0.0
        %1429 = vmatpush1.msra.mxu0 0.0
        %1430 = vmatprep.subr.mxu0 0.0
        %1431 = vmatpush1.msra.mxu0 0.0
        %1432 = vmatprep.subr.mxu0 0.0
        %1433 = vmatpush1.msra.mxu0 0.0
        %1434 = vmatprep.mubr.f32.mxu0 0.0
        %v1435 = vand.u32 %v976, 4294901760
        %1436 = vmatmul.mubr.f32.gmra.mrb[0].mxu0 %v1435
        %v1437 = vpop.f32.mrb[0].mxu0
        %v1438 = vadd.f32 %v1365, %v1437
        %v1439 = vpop.f32.mrb[0].mxu0
        %1440 = vdwg.mxu0
        %v1441 = vld [vmem:[%s289] sm:$0xff]
        %v1442 = vadd.f32 %v1438, %v1441
        %1443 = vst [vmem:[%s271] sm:$0xff] %v1442
        %s1444 = sand.u32 %s165, 1
        %s1445 = scalar_lea.sflag [#allocation3], %s1444
        %s1446 = sand.u32 %s165, 1
        %s1447 = smul.addr %s1446, 8
        %s1448 = scalar_lea.vmem [#allocation2], %s1447
        // Predicated region
        $region41: #{forward.1} parent=39 // pred_check
          %p1449 = pneg %p175
        $region42: #{forward.1} parent=39 // pred_check_branch
          %1451 = sbr.rel (%p1449) target = $region44
        $region43: #{forward.1} parent=39 // pred_region
          %s1453 = ssub.s32 128, 128
          %1454 = vsyncadd %s1445, %s1453
          %s1455 = sadd.s32 %s24, %s23
          %s1456 = smul.addr %s1455, 128
          %s1457 = scalar_lea.hbm %s5, %s1456
          %s1459 = sshll.u32 %s1448, 4
          %s1460 = int_to_ptr.vmem [resolvable:$true] %s1459
          %1462 = dma.vmem_to_hbm [thread:$0]  %s1460, 128, %s1457, %s1445
        $region44: #{forward.1} parent=39 // pred_fallthru
          _
      $region40: #{forward.1} parent=5 // pred_fallthru
        _
      %p1463 = scmp.le.s32.totalorder 2, %s14
      // Predicated region
      $region45: #{forward.1} parent=5 // pred_check
        %p1464 = pneg %p1463
      $region46: #{forward.1} parent=5 // pred_check_branch
        %1466 = sbr.rel (%p1464) target = $region48
      $region47: #{forward.1} parent=5 // pred_region
        %s1467 = ssub.s32 %s14, 2
        // Predicated region
        $region49: #{forward.1} parent=47 // pred_check
          %p1468 = pneg %p181
        $region50: #{forward.1} parent=47 // pred_check_branch
          %1470 = sbr.rel (%p1468) target = $region52
        $region51: #{forward.1} parent=47 // pred_region
          %s1471 = sand.u32 %s166, 1
          %s1472 = scalar_lea.sflag [#allocation3], %s1471
          %s1473 = sand.u32 %s166, 1
          %s1474 = smul.addr %s1473, 8
          %s1475 = scalar_lea.vmem [#allocation2], %s1474
          %1476 = dma.done %s1472, 128
        $region52: #{forward.1} parent=47 // pred_fallthru
          _
      $region48: #{forward.1} parent=5 // pred_fallthru
        _
    $region6: #{forward.1} parent=1 // loop_footer
      %s18 = sadd.s32 1, %s14
    $region7: #{forward.1} parent=1 // loop_footer_branch
      %13 = sbr.rel target = $region3
    $region8: #{forward.1} parent=1 // loop_exit
      _
    %1477 = vsyncpa [#allocation3], 1
    %s1478 = scalar_lea.sflag [#allocation3], 1
    %1479 = vsyncpa %s1478, 1

</llo_original>
